<compile_context>
chip_gen: v6e
topology: v6e:2x2x1
jax: 0.10.0
libtpu: 0.0.40
codegen_flags: <defaults>
</compile_context>

<pallas_src>
import functools

import jax
import jax.numpy as jnp
import numpy as np
from jax import lax
from jax.experimental import pallas as pl
from jax.experimental.pallas import tpu as pltpu


# -----------------------------------------------------------------------------
# Fused kernel: conv1(3x3)+PReLU -> reflect blur-pool (stride 2) -> conv2(1x1)
# One grid step = one batch element x one tile of TRo output rows.
# -----------------------------------------------------------------------------
def _fused_downsample_kernel(xpar_ref, w1_ref, w2e_ref, w2o_ref, alpha_ref, o_ref):
    # xpar_ref : (2, SLAB, We, C)  zero-padded, column-parity-split input rows
    #            (parity 0 = even padded columns, 1 = odd), SLAB = 2*TRo + 3.
    # w1_ref   : (9C, C)   conv1 weight, rows ordered (ky, kx, ci).
    # w2e_ref  : (3C, 2C)  blur(dx=1)-folded 1x1 conv weight, rows (dy, ci).
    # w2o_ref  : (3C, 4C)  [blur(dx=0) | blur(dx=2)]-folded 1x1 conv weight.
    # alpha_ref: (1,) f32 SMEM, PReLU slope.
    # o_ref    : (TRo, Wo*2C) f32 (lane-dense) or (TRo, Wo, 2C) f32.
    _, SLAB, We, C = xpar_ref.shape
    Wo = We - 1
    SLABY = SLAB - 2            # conv1 rows kept in VMEM (= 2*TRo + 1)
    TRo = (SLABY - 1) // 2
    P = SLABY * Wo              # conv1 pixels per column parity
    Q = TRo * Wo                # output pixels in this tile
    C2 = 2 * C
    cdt = xpar_ref.dtype

    xe = xpar_ref[0]            # (SLAB, We, C)
    xo = xpar_ref[1]

    # Hoisted column-shifted views (only the c0=1 ones are misaligned copies).
    xe0 = xe[:, :Wo, :]
    xo0 = xo[:, :Wo, :]
    xe1 = xe[:, 1:, :]
    xo1 = xo[:, 1:, :]

    # ---- stage 1: 3x3 conv (zero pad baked into the slab) -------------------
    # One big-K matmul per output-column parity: the 9 taps are stacked along
    # K (K = 9*C) instead of 9 separate K=C dots per parity.
    taps_e, taps_o = [], []
    for dy in range(3):
        sl = slice(dy, dy + SLABY)                    # leading-dim slice only
        taps_e += [xe0[sl], xo0[sl], xe1[sl]]         # dx = 0, 1, 2 (even cols)
        taps_o += [xo0[sl], xe1[sl], xo1[sl]]         # dx = 0, 1, 2 (odd cols)
    lhs_e = jnp.concatenate(taps_e, axis=-1).reshape(P, 9 * C)
    lhs_o = jnp.concatenate(taps_o, axis=-1).reshape(P, 9 * C)
    # NOTE: default MXU precision (f32 verification path in __main__ is
    # therefore a default-precision matmul, checked at 3e-3).
    acc_e = jnp.dot(lhs_e, w1_ref[...], preferred_element_type=jnp.float32)
    acc_o = jnp.dot(lhs_o, w1_ref[...], preferred_element_type=jnp.float32)

    # PReLU in f32, back to compute dtype for the stage-2 matmuls.
    a = alpha_ref[0]
    ye = jnp.where(acc_e > 0, acc_e, a * acc_e).astype(cdt).reshape(SLABY, Wo, C)
    yo = jnp.where(acc_o > 0, acc_o, a * acc_o).astype(cdt).reshape(SLABY, Wo, C)

    # ---- stage 2: reflect-pad blur-pool (stride 2) folded into the 1x1 conv -
    # Output row k of this tile reads local conv1 rows 2k, 2k+1, 2k+2.
    ye_p0 = ye[:2 * TRo].reshape(TRo, 2, Wo, C)   # [:, 0] -> rows 0,2,...,2TRo-2
    ye_p1 = ye[1:].reshape(TRo, 2, Wo, C)         # [:, 0] odd rows, [:, 1] rows 2..2TRo
    yo_p0 = yo[:2 * TRo].reshape(TRo, 2, Wo, C)
    yo_p1 = yo[1:].reshape(TRo, 2, Wo, C)

    # Top-edge reflection: conv1 row -1 reflects to row 1 (= local row 2).  It
    # is only read by the dy=0 tap of output row 0 of the FIRST row tile (and
    # local row 0 of that tile is garbage built from the doubled clamped pad
    # row), so patch just that single (Wo, C) row instead of a full-slab
    # broadcast + select.
    is_first = pl.program_id(1) == 0

    def dy0_tap(p0, p1):
        row0 = jnp.where(is_first, p1[0, 1], p0[0, 0])[None]   # p1[0,1] = local row 2
        if TRo == 1:
            return row0
        return jnp.concatenate([row0, p0[1:, 0]], axis=0)

    re0 = dy0_tap(ye_p0, ye_p1)
    ro0 = dy0_tap(yo_p0, yo_p1)

    # Stack the 3 dy taps along K (K = 3C).
    lhs_re = jnp.concatenate([re0, ye_p1[:, 0], ye_p1[:, 1]],
                             axis=-1).reshape(Q, 3 * C)
    lhs_ro = jnp.concatenate([ro0, yo_p1[:, 0], yo_p1[:, 1]],
                             axis=-1).reshape(Q, 3 * C)

    B = jnp.dot(lhs_re, w2e_ref[...], preferred_element_type=jnp.float32)   # dx = 1
    AC = jnp.dot(lhs_ro, w2o_ref[...], preferred_element_type=jnp.float32)  # dx = 0 | 2
    A = AC[:, :C2]
    Cc = AC[:, C2:]

    # dx=0 uses the previous odd y column; at wo=0 it reflects to odd column 0
    # (y column 1).  Shift by one output pixel and patch the wo==0 rows.
    a_prev = pltpu.roll(A, shift=1, axis=0)              # a_prev[q] = A[q-1]
    colidx = lax.broadcasted_iota(jnp.int32, (TRo, Wo, C2), 1).reshape(Q, C2)
    a_shift = jnp.where(colidx == 0, A, a_prev)

    out = a_shift + B + Cc                               # (Q, 2C) f32
    if len(o_ref.shape) == 2:
        o_ref[...] = out.reshape(TRo, Wo * C2)           # lane-dense store
    else:
        o_ref[...] = out.reshape(TRo, Wo, C2)


# -----------------------------------------------------------------------------
# VMEM-budget-based row-tile selection (accounts for the im2col lhs, f32
# accumulators and double-buffered in/out blocks, not just the input slab).
# -----------------------------------------------------------------------------
def _vmem_bytes_estimate(TRo, Wo, C, itemsize):
    SLAB, SLABY = 2 * TRo + 3, 2 * TRo + 1
    P, Q = SLABY * Wo, TRo * Wo
    est = 0
    est += 2 * 2 * SLAB * (Wo + 1) * C * itemsize   # double-buffered input slab
    est += 2 * SLAB * Wo * C * itemsize             # hoisted shifted views
    est += 2 * P * 9 * C * itemsize                 # stage-1 big-K lhs (both parities)
    est += 2 * P * C * 4                            # conv1 f32 accumulators
    est += 2 * P * C * itemsize                     # ye / yo
    est += 2 * 2 * Q * 3 * C * itemsize             # stage-2 lhs (+ extraction temps)
    est += Q * 6 * C * 4                            # AC + B f32
    est += 2 * Q * 2 * C * 4 * 2                    # out tile + double-buffered out block
    return est


def _pick_row_tile(Ho, Wo, C, itemsize, flatten_out, budget=24 << 20):
    cands = [d for d in range(1, Ho + 1) if Ho % d == 0]
    if flatten_out:
        # lane-dense output blocks need second-minor (TRo) % 8 == 0 or == Ho
        cands = [d for d in cands if d % 8 == 0 or d == Ho]
    cands = sorted(cands)
    best = cands[0]
    for d in cands:
        if _vmem_bytes_estimate(d, Wo, C, itemsize) <= budget:
            best = d
    return best


# -----------------------------------------------------------------------------
# Wrapper: NCHW in/out; wrapper-side prep is O(|x|) (pad / parity split / row
# slabs), all heavy work happens inside the single fused pallas_call.
# -----------------------------------------------------------------------------
def downsample_forward(x_nchw, w1_oihw, alpha, blur33, w2_oihw, *,
                       row_tile=None, compute_dtype=jnp.bfloat16,
                       flatten_out=None):
    N, C, H, W = x_nchw.shape
    assert H % 2 == 0 and W % 2 == 0, "even spatial dims required"
    Ho, Wo = H // 2, W // 2
    # Keeps every in-kernel reshape sublane-aligned (dims collapsed with Wo
    # stay multiples of 8).
    assert Wo % 8 == 0, "W must be a multiple of 16 for this kernel"

    cdt = compute_dtype
    itemsize = np.dtype(compute_dtype).itemsize
    if flatten_out is None:
        # Only flatten when the natural (..., 2C) store would not be lane-dense.
        flatten_out = (2 * C) % 128 != 0

    if row_tile is None:
        row_tile = _pick_row_tile(Ho, Wo, C, itemsize, flatten_out)
    TRo = row_tile
    assert Ho % TRo == 0, "row_tile must divide H // 2"
    if flatten_out:
        assert TRo % 8 == 0 or TRo == Ho, (
            "lane-dense output blocks need row_tile % 8 == 0 (or == H//2)")
    n_tiles = Ho // TRo
    SLAB = 2 * TRo + 3          # conv halo (2 rows) + blur halo (1 row)
    We = Wo + 1

    # ---- layout prep (plain JAX glue, O(|x|) HBM) ---------------------------
    x = jnp.transpose(x_nchw, (0, 2, 3, 1)).astype(cdt)            # NHWC
    xp = jnp.pad(x, ((0, 0), (1, 1), (1, 1), (0, 0)))              # conv zero pad
    # split padded width into even / odd columns -> (N, 2, H+2, We, C)
    xpar = jnp.stack([xp[:, :, 0::2, :], xp[:, :, 1::2, :]], axis=1)
    # Overlapping row slabs (conv + blur halo).  NOTE (correctness coupling):
    # for the first tile the clamp duplicates padded row 0, so the first conv1
    # row of that slab is garbage -- the kernel's top-edge reflection patch
    # overwrites exactly that row.  Keep both in sync if SLAB/row_idx change.
    row_idx = np.clip(
        2 * TRo * np.arange(n_tiles)[:, None] - 1 + np.arange(SLAB)[None, :],
        0, H + 1)
    xslabs = jnp.moveaxis(xpar[:, :, row_idx], 1, 2)  # (N, n_tiles, 2, SLAB, We, C)
    # TODO(synk): replace this HBM gather with an in-kernel double-buffered
    # make_async_copy from xpar (memory_space=pl.ANY) to drop the extra HBM
    # write+read of the input entirely.

    # ---- fold the fixed blur filter into the weights ------------------------
    w1k = jnp.transpose(w1_oihw, (2, 3, 1, 0)).reshape(9 * C, C).astype(cdt)
    w2_mat = jnp.transpose(w2_oihw[:, :, 0, 0], (1, 0)).astype(jnp.float32)  # (C, 2C)
    b = blur33.astype(jnp.float32)
    w2e = (b[:, 1][:, None, None] * w2_mat[None]).reshape(3 * C, 2 * C).astype(cdt)
    w2o = jnp.concatenate(
        [b[:, 0][:, None, None] * w2_mat[None],
         b[:, 2][:, None, None] * w2_mat[None]], axis=2,
    ).reshape(3 * C, 4 * C).astype(cdt)
    alpha_arr = jnp.asarray(alpha, jnp.float32).reshape(1)

    flops = (2 * N * H * W * C * 9 * C              # conv1 (im2col matmuls)
             + 2 * N * Ho * Wo * 3 * C * 6 * C)     # blur folded into 1x1 conv
    bytes_accessed = (xslabs.size * xslabs.dtype.itemsize
                      + N * Ho * Wo * 2 * C * 4
                      + w1k.size * w1k.dtype.itemsize
                      + w2e.size * w2e.dtype.itemsize
                      + w2o.size * w2o.dtype.itemsize)

    if flatten_out:
        out_shape = jax.ShapeDtypeStruct((N, Ho, Wo * 2 * C), jnp.float32)
        out_spec = pl.BlockSpec((None, TRo, Wo * 2 * C), lambda n, t: (n, t, 0))
    else:
        out_shape = jax.ShapeDtypeStruct((N, Ho, Wo, 2 * C), jnp.float32)
        out_spec = pl.BlockSpec((None, TRo, Wo, 2 * C), lambda n, t: (n, t, 0, 0))

    out = pl.pallas_call(
        _fused_downsample_kernel,
        out_shape=out_shape,
        grid=(N, n_tiles),
        in_specs=[
            pl.BlockSpec((None, None, 2, SLAB, We, C),
                         lambda n, t: (n, t, 0, 0, 0, 0)),
            pl.BlockSpec((9 * C, C), lambda n, t: (0, 0)),
            pl.BlockSpec((3 * C, 2 * C), lambda n, t: (0, 0)),
            pl.BlockSpec((3 * C, 4 * C), lambda n, t: (0, 0)),
            pl.BlockSpec(memory_space=pltpu.MemorySpace.SMEM),
        ],
        out_specs=out_spec,
        compiler_params=pltpu.CompilerParams(
            dimension_semantics=("parallel", "parallel"),
            vmem_limit_bytes=48 * 1024 * 1024),
        cost_estimate=pl.CostEstimate(flops=flops, transcendentals=0,
                                      bytes_accessed=bytes_accessed),
    )(xslabs, w1k, w2e, w2o, alpha_arr)

    if flatten_out:
        out = out.reshape(N, Ho, Wo, 2 * C)
    return jnp.transpose(out, (0, 3, 1, 2))          # back to NCHW


# -----------------------------------------------------------------------------
# Pure-JAX reference (mirrors the PyTorch module exactly) for verification.
# -----------------------------------------------------------------------------
def reference_forward(x_nchw, w1_oihw, alpha, blur33, w2_oihw):
    hp = lax.Precision.HIGHEST
    y = lax.conv_general_dilated(
        x_nchw, w1_oihw, (1, 1), ((1, 1), (1, 1)),
        dimension_numbers=("NCHW", "OIHW", "NCHW"), precision=hp)
    y = jnp.where(y > 0, y, alpha * y)                            # PReLU
    yp = jnp.pad(y, ((0, 0), (0, 0), (1, 1), (1, 1)), mode="reflect")
    C = y.shape[1]
    blur_w = jnp.broadcast_to(blur33[None, None, :, :], (C, 1, 3, 3))
    z = lax.conv_general_dilated(
        yp, blur_w, (2, 2), "VALID",
        dimension_numbers=("NCHW", "OIHW", "NCHW"),
        feature_group_count=C, precision=hp)
    out = lax.conv_general_dilated(
        z, w2_oihw, (1, 1), "VALID",
        dimension_numbers=("NCHW", "OIHW", "NCHW"), precision=hp)
    return out


if __name__ == "__main__":
    N, C, H, W = 2, 4, 16, 16

    key = jax.random.PRNGKey(0)
    kx, k1, k2, kx2 = jax.random.split(key, 4)
    x = jax.random.normal(kx, (N, C, H, W), jnp.float32)

    # Deterministic synthetic parameters (shapes follow the nn.Module __init__)
    w1 = 0.1 * jax.random.normal(k1, (C, C, 3, 3), jnp.float32)      # conv1
    alpha = jnp.float32(0.25)                                        # nn.PReLU()
    blur_1d = jnp.array([1.0, 2.0, 1.0], jnp.float32)
    blur33 = (blur_1d[:, None] * blur_1d[None, :]) / 16.0            # filt_size=3
    w2 = 0.1 * jax.random.normal(k2, (2 * C, C, 1, 1), jnp.float32)  # conv2

    ref = jax.block_until_ready(reference_forward(x, w1, alpha, blur33, w2))

    def check(xx, ref_out, *, compute_dtype, flatten_out, row_tile, tol):
        fwd = jax.jit(functools.partial(
            downsample_forward, row_tile=row_tile,
            compute_dtype=compute_dtype, flatten_out=flatten_out))
        out = jax.block_until_ready(fwd(xx, w1, alpha, blur33, w2))
        assert out.shape == ref_out.shape, (out.shape, ref_out.shape)
        np.testing.assert_allclose(np.asarray(out), np.asarray(ref_out),
                                   rtol=tol, atol=tol)

    # f32 compute path: numerical check.  Prefer the lane-dense (flattened)
    # output store; if the backend rejects the final minor-dim-merging
    # reshape, fall back to the 3-D output block layout.
    flatten = True
    try:
        check(x, ref, compute_dtype=jnp.float32, flatten_out=True,
              row_tile=None, tol=3e-3)
    except AssertionError:
        raise
    except Exception:
        flatten = False
        check(x, ref, compute_dtype=jnp.float32, flatten_out=False,
              row_tile=None, tol=3e-3)

    # bf16 compute path (recommended perf config; f32 accumulation on MXU).
    check(x, ref, compute_dtype=jnp.bfloat16, flatten_out=flatten,
          row_tile=None, tol=3e-2)

    # Multi-row-tile grid: exercises the halo slabs and the top-edge
    # reflection guard across row tiles.
    x2 = jax.random.normal(kx2, (1, C, 32, 32), jnp.float32)
    ref2 = jax.block_until_ready(reference_forward(x2, w1, alpha, blur33, w2))
    check(x2, ref2, compute_dtype=jnp.float32, flatten_out=flatten,
          row_tile=8, tol=3e-3)

    print("KERNEL_OK")
</pallas_src>

<mosaic_0001>
module attributes {stable_mosaic.version = 11 : i64} {
  func.func @_fused_downsample_kernel(%arg0: i32, %arg1: i32, %arg2: memref<1x1x2x19x9x4xf32, #tpu.memory_space<vmem>>, %arg3: memref<36x4xf32, #tpu.memory_space<vmem>>, %arg4: memref<12x8xf32, #tpu.memory_space<vmem>>, %arg5: memref<12x16xf32, #tpu.memory_space<vmem>>, %arg6: memref<1xf32, #tpu.memory_space<smem>>, %arg7: memref<1x8x64xf32, #tpu.memory_space<vmem>>) attributes {dimension_semantics = [#tpu.dimension_semantics<parallel>, #tpu.dimension_semantics<parallel>], iteration_bounds = array<i64: 2, 1>, scalar_prefetch = 0 : i64, scratch_operands = 0 : i64, tpu.core_type = #tpu.core_type<tc>, window_params = [{transform_indices = @transform_0, window_bounds = array<i64: 1, 1, 2, 19, 9, 4>}, {pipeline_mode = #tpu.pipeline_mode<synchronous>, transform_indices = @transform_1, window_bounds = array<i64: 36, 4>}, {pipeline_mode = #tpu.pipeline_mode<synchronous>, transform_indices = @transform_2, window_bounds = array<i64: 12, 8>}, {pipeline_mode = #tpu.pipeline_mode<synchronous>, transform_indices = @transform_3, window_bounds = array<i64: 12, 16>}, {transform_indices = @transform_4, window_bounds = array<i64: 1>}, {transform_indices = @transform_5, window_bounds = array<i64: 1, 8, 64>}]} {
    %c0 = arith.constant 0 : index
    %c0_0 = arith.constant 0 : index
    %c0_1 = arith.constant 0 : index
    %c0_2 = arith.constant 0 : index
    %c0_3 = arith.constant 0 : index
    %c0_4 = arith.constant 0 : index
    %0 = vector.load %arg2[%c0, %c0_0, %c0_1, %c0_2, %c0_3, %c0_4] : memref<1x1x2x19x9x4xf32, #tpu.memory_space<vmem>>, vector<1x1x1x19x9x4xf32>
    %1 = vector.shape_cast %0 : vector<1x1x1x19x9x4xf32> to vector<19x9x4xf32>
    %c0_5 = arith.constant 0 : index
    %c0_6 = arith.constant 0 : index
    %c1 = arith.constant 1 : index
    %c0_7 = arith.constant 0 : index
    %c0_8 = arith.constant 0 : index
    %c0_9 = arith.constant 0 : index
    %2 = vector.load %arg2[%c0_5, %c0_6, %c1, %c0_7, %c0_8, %c0_9] : memref<1x1x2x19x9x4xf32, #tpu.memory_space<vmem>>, vector<1x1x1x19x9x4xf32>
    %3 = vector.shape_cast %2 : vector<1x1x1x19x9x4xf32> to vector<19x9x4xf32>
    %4 = vector.extract_strided_slice %1 {offsets = [0, 0, 0], sizes = [19, 8, 4], strides = [1, 1, 1]} : vector<19x9x4xf32> to vector<19x8x4xf32>
    %5 = vector.extract_strided_slice %3 {offsets = [0, 0, 0], sizes = [19, 8, 4], strides = [1, 1, 1]} : vector<19x9x4xf32> to vector<19x8x4xf32>
    %6 = vector.extract_strided_slice %1 {offsets = [0, 1, 0], sizes = [19, 8, 4], strides = [1, 1, 1]} : vector<19x9x4xf32> to vector<19x8x4xf32>
    %7 = vector.extract_strided_slice %3 {offsets = [0, 1, 0], sizes = [19, 8, 4], strides = [1, 1, 1]} : vector<19x9x4xf32> to vector<19x8x4xf32>
    %8 = vector.extract_strided_slice %4 {offsets = [0, 0, 0], sizes = [17, 8, 4], strides = [1, 1, 1]} : vector<19x8x4xf32> to vector<17x8x4xf32>
    %9 = vector.extract_strided_slice %5 {offsets = [0, 0, 0], sizes = [17, 8, 4], strides = [1, 1, 1]} : vector<19x8x4xf32> to vector<17x8x4xf32>
    %10 = vector.extract_strided_slice %6 {offsets = [0, 0, 0], sizes = [17, 8, 4], strides = [1, 1, 1]} : vector<19x8x4xf32> to vector<17x8x4xf32>
    %11 = vector.extract_strided_slice %5 {offsets = [0, 0, 0], sizes = [17, 8, 4], strides = [1, 1, 1]} : vector<19x8x4xf32> to vector<17x8x4xf32>
    %12 = vector.extract_strided_slice %6 {offsets = [0, 0, 0], sizes = [17, 8, 4], strides = [1, 1, 1]} : vector<19x8x4xf32> to vector<17x8x4xf32>
    %13 = vector.extract_strided_slice %7 {offsets = [0, 0, 0], sizes = [17, 8, 4], strides = [1, 1, 1]} : vector<19x8x4xf32> to vector<17x8x4xf32>
    %14 = vector.extract_strided_slice %4 {offsets = [1, 0, 0], sizes = [17, 8, 4], strides = [1, 1, 1]} : vector<19x8x4xf32> to vector<17x8x4xf32>
    %15 = vector.extract_strided_slice %5 {offsets = [1, 0, 0], sizes = [17, 8, 4], strides = [1, 1, 1]} : vector<19x8x4xf32> to vector<17x8x4xf32>
    %16 = vector.extract_strided_slice %6 {offsets = [1, 0, 0], sizes = [17, 8, 4], strides = [1, 1, 1]} : vector<19x8x4xf32> to vector<17x8x4xf32>
    %17 = vector.extract_strided_slice %5 {offsets = [1, 0, 0], sizes = [17, 8, 4], strides = [1, 1, 1]} : vector<19x8x4xf32> to vector<17x8x4xf32>
    %18 = vector.extract_strided_slice %6 {offsets = [1, 0, 0], sizes = [17, 8, 4], strides = [1, 1, 1]} : vector<19x8x4xf32> to vector<17x8x4xf32>
    %19 = vector.extract_strided_slice %7 {offsets = [1, 0, 0], sizes = [17, 8, 4], strides = [1, 1, 1]} : vector<19x8x4xf32> to vector<17x8x4xf32>
    %20 = vector.extract_strided_slice %4 {offsets = [2, 0, 0], sizes = [17, 8, 4], strides = [1, 1, 1]} : vector<19x8x4xf32> to vector<17x8x4xf32>
    %21 = vector.extract_strided_slice %5 {offsets = [2, 0, 0], sizes = [17, 8, 4], strides = [1, 1, 1]} : vector<19x8x4xf32> to vector<17x8x4xf32>
    %22 = vector.extract_strided_slice %6 {offsets = [2, 0, 0], sizes = [17, 8, 4], strides = [1, 1, 1]} : vector<19x8x4xf32> to vector<17x8x4xf32>
    %23 = vector.extract_strided_slice %5 {offsets = [2, 0, 0], sizes = [17, 8, 4], strides = [1, 1, 1]} : vector<19x8x4xf32> to vector<17x8x4xf32>
    %24 = vector.extract_strided_slice %6 {offsets = [2, 0, 0], sizes = [17, 8, 4], strides = [1, 1, 1]} : vector<19x8x4xf32> to vector<17x8x4xf32>
    %25 = vector.extract_strided_slice %7 {offsets = [2, 0, 0], sizes = [17, 8, 4], strides = [1, 1, 1]} : vector<19x8x4xf32> to vector<17x8x4xf32>
    %26 = tpu.concatenate %8, %9, %10, %14, %15, %16, %20, %21, %22 in 2 : vector<17x8x4xf32>, vector<17x8x4xf32>, vector<17x8x4xf32>, vector<17x8x4xf32>, vector<17x8x4xf32>, vector<17x8x4xf32>, vector<17x8x4xf32>, vector<17x8x4xf32>, vector<17x8x4xf32> -> vector<17x8x36xf32>
    %27 = vector.shape_cast %26 : vector<17x8x36xf32> to vector<136x36xf32>
    %28 = tpu.concatenate %11, %12, %13, %17, %18, %19, %23, %24, %25 in 2 : vector<17x8x4xf32>, vector<17x8x4xf32>, vector<17x8x4xf32>, vector<17x8x4xf32>, vector<17x8x4xf32>, vector<17x8x4xf32>, vector<17x8x4xf32>, vector<17x8x4xf32>, vector<17x8x4xf32> -> vector<17x8x36xf32>
    %29 = vector.shape_cast %28 : vector<17x8x36xf32> to vector<136x36xf32>
    %c0_10 = arith.constant 0 : index
    %c0_11 = arith.constant 0 : index
    %30 = vector.load %arg3[%c0_10, %c0_11] : memref<36x4xf32, #tpu.memory_space<vmem>>, vector<36x4xf32>
    %cst = arith.constant dense<0.000000e+00> : vector<136x4xf32>
    %31 = tpu.matmul %27, %30, %cst {dimension_numbers = #tpu.dot_dimension_numbers<[1], [0], [0], [1], [0, 0, 1, 1], [], []>} : vector<136x36xf32>, vector<36x4xf32>, vector<136x4xf32> -> vector<136x4xf32>
    %c0_12 = arith.constant 0 : index
    %c0_13 = arith.constant 0 : index
    %32 = vector.load %arg3[%c0_12, %c0_13] : memref<36x4xf32, #tpu.memory_space<vmem>>, vector<36x4xf32>
    %cst_14 = arith.constant dense<0.000000e+00> : vector<136x4xf32>
    %33 = tpu.matmul %29, %32, %cst_14 {dimension_numbers = #tpu.dot_dimension_numbers<[1], [0], [0], [1], [0, 0, 1, 1], [], []>} : vector<136x36xf32>, vector<36x4xf32>, vector<136x4xf32> -> vector<136x4xf32>
    %c0_15 = arith.constant 0 : index
    %34 = memref.load %arg6[%c0_15] : memref<1xf32, #tpu.memory_space<smem>>
    %cst_16 = arith.constant 0.000000e+00 : f32
    %35 = vector.broadcast %cst_16 : f32 to vector<136x4xf32>
    %36 = arith.cmpf ogt, %31, %35 : vector<136x4xf32>
    %37 = vector.broadcast %34 : f32 to vector<136x4xf32>
    %38 = arith.mulf %37, %31 : vector<136x4xf32>
    %39 = arith.select %36, %31, %38 : vector<136x4xi1>, vector<136x4xf32>
    %40 = vector.shape_cast %39 : vector<136x4xf32> to vector<17x8x4xf32>
    %cst_17 = arith.constant 0.000000e+00 : f32
    %41 = vector.broadcast %cst_17 : f32 to vector<136x4xf32>
    %42 = arith.cmpf ogt, %33, %41 : vector<136x4xf32>
    %43 = vector.broadcast %34 : f32 to vector<136x4xf32>
    %44 = arith.mulf %43, %33 : vector<136x4xf32>
    %45 = arith.select %42, %33, %44 : vector<136x4xi1>, vector<136x4xf32>
    %46 = vector.shape_cast %45 : vector<136x4xf32> to vector<17x8x4xf32>
    %47 = vector.extract_strided_slice %40 {offsets = [0, 0, 0], sizes = [16, 8, 4], strides = [1, 1, 1]} : vector<17x8x4xf32> to vector<16x8x4xf32>
    %48 = vector.shape_cast %47 : vector<16x8x4xf32> to vector<8x2x8x4xf32>
    %49 = vector.extract_strided_slice %40 {offsets = [1, 0, 0], sizes = [16, 8, 4], strides = [1, 1, 1]} : vector<17x8x4xf32> to vector<16x8x4xf32>
    %50 = vector.shape_cast %49 : vector<16x8x4xf32> to vector<8x2x8x4xf32>
    %51 = vector.extract_strided_slice %46 {offsets = [0, 0, 0], sizes = [16, 8, 4], strides = [1, 1, 1]} : vector<17x8x4xf32> to vector<16x8x4xf32>
    %52 = vector.shape_cast %51 : vector<16x8x4xf32> to vector<8x2x8x4xf32>
    %53 = vector.extract_strided_slice %46 {offsets = [1, 0, 0], sizes = [16, 8, 4], strides = [1, 1, 1]} : vector<17x8x4xf32> to vector<16x8x4xf32>
    %54 = vector.shape_cast %53 : vector<16x8x4xf32> to vector<8x2x8x4xf32>
    %c0_i32 = arith.constant 0 : i32
    %55 = arith.cmpi eq, %arg1, %c0_i32 : i32
    %56 = vector.extract_strided_slice %50 {offsets = [0, 1, 0, 0], sizes = [1, 1, 8, 4], strides = [1, 1, 1, 1]} : vector<8x2x8x4xf32> to vector<1x1x8x4xf32>
    %57 = vector.shape_cast %56 : vector<1x1x8x4xf32> to vector<8x4xf32>
    %58 = vector.extract_strided_slice %48 {offsets = [0, 0, 0, 0], sizes = [1, 1, 8, 4], strides = [1, 1, 1, 1]} : vector<8x2x8x4xf32> to vector<1x1x8x4xf32>
    %59 = vector.shape_cast %58 : vector<1x1x8x4xf32> to vector<8x4xf32>
    %60 = arith.select %55, %57, %59 : vector<8x4xf32>
    %61 = vector.shape_cast %60 : vector<8x4xf32> to vector<1x8x4xf32>
    %62 = vector.extract_strided_slice %48 {offsets = [1, 0, 0, 0], sizes = [7, 1, 8, 4], strides = [1, 1, 1, 1]} : vector<8x2x8x4xf32> to vector<7x1x8x4xf32>
    %63 = vector.shape_cast %62 : vector<7x1x8x4xf32> to vector<7x8x4xf32>
    %64 = tpu.concatenate %61, %63 in 0 : vector<1x8x4xf32>, vector<7x8x4xf32> -> vector<8x8x4xf32>
    %65 = vector.extract_strided_slice %54 {offsets = [0, 1, 0, 0], sizes = [1, 1, 8, 4], strides = [1, 1, 1, 1]} : vector<8x2x8x4xf32> to vector<1x1x8x4xf32>
    %66 = vector.shape_cast %65 : vector<1x1x8x4xf32> to vector<8x4xf32>
    %67 = vector.extract_strided_slice %52 {offsets = [0, 0, 0, 0], sizes = [1, 1, 8, 4], strides = [1, 1, 1, 1]} : vector<8x2x8x4xf32> to vector<1x1x8x4xf32>
    %68 = vector.shape_cast %67 : vector<1x1x8x4xf32> to vector<8x4xf32>
    %69 = arith.select %55, %66, %68 : vector<8x4xf32>
    %70 = vector.shape_cast %69 : vector<8x4xf32> to vector<1x8x4xf32>
    %71 = vector.extract_strided_slice %52 {offsets = [1, 0, 0, 0], sizes = [7, 1, 8, 4], strides = [1, 1, 1, 1]} : vector<8x2x8x4xf32> to vector<7x1x8x4xf32>
    %72 = vector.shape_cast %71 : vector<7x1x8x4xf32> to vector<7x8x4xf32>
    %73 = tpu.concatenate %70, %72 in 0 : vector<1x8x4xf32>, vector<7x8x4xf32> -> vector<8x8x4xf32>
    %74 = vector.extract_strided_slice %50 {offsets = [0, 0, 0, 0], sizes = [8, 1, 8, 4], strides = [1, 1, 1, 1]} : vector<8x2x8x4xf32> to vector<8x1x8x4xf32>
    %75 = vector.shape_cast %74 : vector<8x1x8x4xf32> to vector<8x8x4xf32>
    %76 = vector.extract_strided_slice %50 {offsets = [0, 1, 0, 0], sizes = [8, 1, 8, 4], strides = [1, 1, 1, 1]} : vector<8x2x8x4xf32> to vector<8x1x8x4xf32>
    %77 = vector.shape_cast %76 : vector<8x1x8x4xf32> to vector<8x8x4xf32>
    %78 = tpu.concatenate %64, %75, %77 in 2 : vector<8x8x4xf32>, vector<8x8x4xf32>, vector<8x8x4xf32> -> vector<8x8x12xf32>
    %79 = vector.shape_cast %78 : vector<8x8x12xf32> to vector<64x12xf32>
    %80 = vector.extract_strided_slice %54 {offsets = [0, 0, 0, 0], sizes = [8, 1, 8, 4], strides = [1, 1, 1, 1]} : vector<8x2x8x4xf32> to vector<8x1x8x4xf32>
    %81 = vector.shape_cast %80 : vector<8x1x8x4xf32> to vector<8x8x4xf32>
    %82 = vector.extract_strided_slice %54 {offsets = [0, 1, 0, 0], sizes = [8, 1, 8, 4], strides = [1, 1, 1, 1]} : vector<8x2x8x4xf32> to vector<8x1x8x4xf32>
    %83 = vector.shape_cast %82 : vector<8x1x8x4xf32> to vector<8x8x4xf32>
    %84 = tpu.concatenate %73, %81, %83 in 2 : vector<8x8x4xf32>, vector<8x8x4xf32>, vector<8x8x4xf32> -> vector<8x8x12xf32>
    %85 = vector.shape_cast %84 : vector<8x8x12xf32> to vector<64x12xf32>
    %c0_18 = arith.constant 0 : index
    %c0_19 = arith.constant 0 : index
    %86 = vector.load %arg4[%c0_18, %c0_19] : memref<12x8xf32, #tpu.memory_space<vmem>>, vector<12x8xf32>
    %cst_20 = arith.constant dense<0.000000e+00> : vector<64x8xf32>
    %87 = tpu.matmul %79, %86, %cst_20 {dimension_numbers = #tpu.dot_dimension_numbers<[1], [0], [0], [1], [0, 0, 1, 1], [], []>} : vector<64x12xf32>, vector<12x8xf32>, vector<64x8xf32> -> vector<64x8xf32>
    %c0_21 = arith.constant 0 : index
    %c0_22 = arith.constant 0 : index
    %88 = vector.load %arg5[%c0_21, %c0_22] : memref<12x16xf32, #tpu.memory_space<vmem>>, vector<12x16xf32>
    %cst_23 = arith.constant dense<0.000000e+00> : vector<64x16xf32>
    %89 = tpu.matmul %85, %88, %cst_23 {dimension_numbers = #tpu.dot_dimension_numbers<[1], [0], [0], [1], [0, 0, 1, 1], [], []>} : vector<64x12xf32>, vector<12x16xf32>, vector<64x16xf32> -> vector<64x16xf32>
    %90 = vector.extract_strided_slice %89 {offsets = [0, 0], sizes = [64, 8], strides = [1, 1]} : vector<64x16xf32> to vector<64x8xf32>
    %91 = vector.extract_strided_slice %89 {offsets = [0, 8], sizes = [64, 8], strides = [1, 1]} : vector<64x16xf32> to vector<64x8xf32>
    %c1_i32 = arith.constant 1 : i32
    %92 = tpu.dynamic_rotate %90 by %c1_i32 dim 0 : vector<64x8xf32>, i32 -> vector<64x8xf32>
    %93 = tpu.iota {dimensions = array<i32: 1>} : vector<8x8x8xi32>
    %94 = vector.shape_cast %93 : vector<8x8x8xi32> to vector<64x8xi32>
    %c0_i32_24 = arith.constant 0 : i32
    %95 = vector.broadcast %c0_i32_24 : i32 to vector<64x8xi32>
    %96 = arith.cmpi eq, %94, %95 : vector<64x8xi32>
    %97 = arith.select %96, %90, %92 : vector<64x8xi1>, vector<64x8xf32>
    %98 = arith.addf %97, %87 : vector<64x8xf32>
    %99 = arith.addf %98, %91 : vector<64x8xf32>
    %100 = vector.shape_cast %99 : vector<64x8xf32> to vector<8x64xf32>
    %c0_25 = arith.constant 0 : index
    %c0_26 = arith.constant 0 : index
    %c0_27 = arith.constant 0 : index
    %101 = vector.load %arg7[%c0_25, %c0_26, %c0_27] : memref<1x8x64xf32, #tpu.memory_space<vmem>>, vector<1x8x64xf32>
    %102 = vector.shape_cast %101 : vector<1x8x64xf32> to vector<8x64xf32>
    %103 = vector.shape_cast %100 : vector<8x64xf32> to vector<1x8x64xf32>
    tpu.vector_store %arg7[%c0_25, %c0_26, %c0_27], %103 {strides = array<i32>} : memref<1x8x64xf32, #tpu.memory_space<vmem>>, vector<1x8x64xf32>,
    return
  }
  func.func @transform_0(%arg0: i32, %arg1: i32) -> (i32, i32, i32, i32, i32, i32) {
    %c0_i32 = arith.constant 0 : i32
    %c0_i32_0 = arith.constant 0 : i32
    %c0_i32_1 = arith.constant 0 : i32
    %c0_i32_2 = arith.constant 0 : i32
    %c0_i32_3 = arith.constant 0 : i32
    return %arg0, %arg1, %c0_i32, %c0_i32_0, %c0_i32_1, %c0_i32_2 : i32, i32, i32, i32, i32, i32
  }
  func.func @transform_1(%arg0: i32, %arg1: i32) -> (i32, i32) {
    %c0_i32 = arith.constant 0 : i32
    %c0_i32_0 = arith.constant 0 : i32
    %c0_i32_1 = arith.constant 0 : i32
    return %c0_i32, %c0_i32_0 : i32, i32
  }
  func.func @transform_2(%arg0: i32, %arg1: i32) -> (i32, i32) {
    %c0_i32 = arith.constant 0 : i32
    %c0_i32_0 = arith.constant 0 : i32
    %c0_i32_1 = arith.constant 0 : i32
    return %c0_i32, %c0_i32_0 : i32, i32
  }
  func.func @transform_3(%arg0: i32, %arg1: i32) -> (i32, i32) {
    %c0_i32 = arith.constant 0 : i32
    %c0_i32_0 = arith.constant 0 : i32
    %c0_i32_1 = arith.constant 0 : i32
    return %c0_i32, %c0_i32_0 : i32, i32
  }
  func.func @transform_4(%arg0: i32, %arg1: i32) -> i32 {
    %c0_i32 = arith.constant 0 : i32
    %c0_i32_0 = arith.constant 0 : i32
    return %c0_i32 : i32
  }
  func.func @transform_5(%arg0: i32, %arg1: i32) -> (i32, i32, i32) {
    %c0_i32 = arith.constant 0 : i32
    %c0_i32_0 = arith.constant 0 : i32
    return %arg0, %arg1, %c0_i32 : i32, i32, i32
  }
}

module attributes {stable_mosaic.version = 11 : i64} {
  func.func @_fused_downsample_kernel(%arg0: i32, %arg1: i32, %arg2: memref<1x1x2x19x9x4xf32, #tpu.memory_space<vmem>>, %arg3: memref<36x4xf32, #tpu.memory_space<vmem>>, %arg4: memref<12x8xf32, #tpu.memory_space<vmem>>, %arg5: memref<12x16xf32, #tpu.memory_space<vmem>>, %arg6: memref<1xf32, #tpu.memory_space<smem>>, %arg7: memref<1x8x8x8xf32, #tpu.memory_space<vmem>>) attributes {dimension_semantics = [#tpu.dimension_semantics<parallel>, #tpu.dimension_semantics<parallel>], iteration_bounds = array<i64: 2, 1>, scalar_prefetch = 0 : i64, scratch_operands = 0 : i64, tpu.core_type = #tpu.core_type<tc>, window_params = [{transform_indices = @transform_0, window_bounds = array<i64: 1, 1, 2, 19, 9, 4>}, {pipeline_mode = #tpu.pipeline_mode<synchronous>, transform_indices = @transform_1, window_bounds = array<i64: 36, 4>}, {pipeline_mode = #tpu.pipeline_mode<synchronous>, transform_indices = @transform_2, window_bounds = array<i64: 12, 8>}, {pipeline_mode = #tpu.pipeline_mode<synchronous>, transform_indices = @transform_3, window_bounds = array<i64: 12, 16>}, {transform_indices = @transform_4, window_bounds = array<i64: 1>}, {transform_indices = @transform_5, window_bounds = array<i64: 1, 8, 8, 8>}]} {
    %c0 = arith.constant 0 : index
    %c0_0 = arith.constant 0 : index
    %c0_1 = arith.constant 0 : index
    %c0_2 = arith.constant 0 : index
    %c0_3 = arith.constant 0 : index
    %c0_4 = arith.constant 0 : index
    %0 = vector.load %arg2[%c0, %c0_0, %c0_1, %c0_2, %c0_3, %c0_4] : memref<1x1x2x19x9x4xf32, #tpu.memory_space<vmem>>, vector<1x1x1x19x9x4xf32>
    %1 = vector.shape_cast %0 : vector<1x1x1x19x9x4xf32> to vector<19x9x4xf32>
    %c0_5 = arith.constant 0 : index
    %c0_6 = arith.constant 0 : index
    %c1 = arith.constant 1 : index
    %c0_7 = arith.constant 0 : index
    %c0_8 = arith.constant 0 : index
    %c0_9 = arith.constant 0 : index
    %2 = vector.load %arg2[%c0_5, %c0_6, %c1, %c0_7, %c0_8, %c0_9] : memref<1x1x2x19x9x4xf32, #tpu.memory_space<vmem>>, vector<1x1x1x19x9x4xf32>
    %3 = vector.shape_cast %2 : vector<1x1x1x19x9x4xf32> to vector<19x9x4xf32>
    %4 = vector.extract_strided_slice %1 {offsets = [0, 0, 0], sizes = [19, 8, 4], strides = [1, 1, 1]} : vector<19x9x4xf32> to vector<19x8x4xf32>
    %5 = vector.extract_strided_slice %3 {offsets = [0, 0, 0], sizes = [19, 8, 4], strides = [1, 1, 1]} : vector<19x9x4xf32> to vector<19x8x4xf32>
    %6 = vector.extract_strided_slice %1 {offsets = [0, 1, 0], sizes = [19, 8, 4], strides = [1, 1, 1]} : vector<19x9x4xf32> to vector<19x8x4xf32>
    %7 = vector.extract_strided_slice %3 {offsets = [0, 1, 0], sizes = [19, 8, 4], strides = [1, 1, 1]} : vector<19x9x4xf32> to vector<19x8x4xf32>
    %8 = vector.extract_strided_slice %4 {offsets = [0, 0, 0], sizes = [17, 8, 4], strides = [1, 1, 1]} : vector<19x8x4xf32> to vector<17x8x4xf32>
    %9 = vector.extract_strided_slice %5 {offsets = [0, 0, 0], sizes = [17, 8, 4], strides = [1, 1, 1]} : vector<19x8x4xf32> to vector<17x8x4xf32>
    %10 = vector.extract_strided_slice %6 {offsets = [0, 0, 0], sizes = [17, 8, 4], strides = [1, 1, 1]} : vector<19x8x4xf32> to vector<17x8x4xf32>
    %11 = vector.extract_strided_slice %5 {offsets = [0, 0, 0], sizes = [17, 8, 4], strides = [1, 1, 1]} : vector<19x8x4xf32> to vector<17x8x4xf32>
    %12 = vector.extract_strided_slice %6 {offsets = [0, 0, 0], sizes = [17, 8, 4], strides = [1, 1, 1]} : vector<19x8x4xf32> to vector<17x8x4xf32>
    %13 = vector.extract_strided_slice %7 {offsets = [0, 0, 0], sizes = [17, 8, 4], strides = [1, 1, 1]} : vector<19x8x4xf32> to vector<17x8x4xf32>
    %14 = vector.extract_strided_slice %4 {offsets = [1, 0, 0], sizes = [17, 8, 4], strides = [1, 1, 1]} : vector<19x8x4xf32> to vector<17x8x4xf32>
    %15 = vector.extract_strided_slice %5 {offsets = [1, 0, 0], sizes = [17, 8, 4], strides = [1, 1, 1]} : vector<19x8x4xf32> to vector<17x8x4xf32>
    %16 = vector.extract_strided_slice %6 {offsets = [1, 0, 0], sizes = [17, 8, 4], strides = [1, 1, 1]} : vector<19x8x4xf32> to vector<17x8x4xf32>
    %17 = vector.extract_strided_slice %5 {offsets = [1, 0, 0], sizes = [17, 8, 4], strides = [1, 1, 1]} : vector<19x8x4xf32> to vector<17x8x4xf32>
    %18 = vector.extract_strided_slice %6 {offsets = [1, 0, 0], sizes = [17, 8, 4], strides = [1, 1, 1]} : vector<19x8x4xf32> to vector<17x8x4xf32>
    %19 = vector.extract_strided_slice %7 {offsets = [1, 0, 0], sizes = [17, 8, 4], strides = [1, 1, 1]} : vector<19x8x4xf32> to vector<17x8x4xf32>
    %20 = vector.extract_strided_slice %4 {offsets = [2, 0, 0], sizes = [17, 8, 4], strides = [1, 1, 1]} : vector<19x8x4xf32> to vector<17x8x4xf32>
    %21 = vector.extract_strided_slice %5 {offsets = [2, 0, 0], sizes = [17, 8, 4], strides = [1, 1, 1]} : vector<19x8x4xf32> to vector<17x8x4xf32>
    %22 = vector.extract_strided_slice %6 {offsets = [2, 0, 0], sizes = [17, 8, 4], strides = [1, 1, 1]} : vector<19x8x4xf32> to vector<17x8x4xf32>
    %23 = vector.extract_strided_slice %5 {offsets = [2, 0, 0], sizes = [17, 8, 4], strides = [1, 1, 1]} : vector<19x8x4xf32> to vector<17x8x4xf32>
    %24 = vector.extract_strided_slice %6 {offsets = [2, 0, 0], sizes = [17, 8, 4], strides = [1, 1, 1]} : vector<19x8x4xf32> to vector<17x8x4xf32>
    %25 = vector.extract_strided_slice %7 {offsets = [2, 0, 0], sizes = [17, 8, 4], strides = [1, 1, 1]} : vector<19x8x4xf32> to vector<17x8x4xf32>
    %26 = tpu.concatenate %8, %9, %10, %14, %15, %16, %20, %21, %22 in 2 : vector<17x8x4xf32>, vector<17x8x4xf32>, vector<17x8x4xf32>, vector<17x8x4xf32>, vector<17x8x4xf32>, vector<17x8x4xf32>, vector<17x8x4xf32>, vector<17x8x4xf32>, vector<17x8x4xf32> -> vector<17x8x36xf32>
    %27 = vector.shape_cast %26 : vector<17x8x36xf32> to vector<136x36xf32>
    %28 = tpu.concatenate %11, %12, %13, %17, %18, %19, %23, %24, %25 in 2 : vector<17x8x4xf32>, vector<17x8x4xf32>, vector<17x8x4xf32>, vector<17x8x4xf32>, vector<17x8x4xf32>, vector<17x8x4xf32>, vector<17x8x4xf32>, vector<17x8x4xf32>, vector<17x8x4xf32> -> vector<17x8x36xf32>
    %29 = vector.shape_cast %28 : vector<17x8x36xf32> to vector<136x36xf32>
    %c0_10 = arith.constant 0 : index
    %c0_11 = arith.constant 0 : index
    %30 = vector.load %arg3[%c0_10, %c0_11] : memref<36x4xf32, #tpu.memory_space<vmem>>, vector<36x4xf32>
    %cst = arith.constant dense<0.000000e+00> : vector<136x4xf32>
    %31 = tpu.matmul %27, %30, %cst {dimension_numbers = #tpu.dot_dimension_numbers<[1], [0], [0], [1], [0, 0, 1, 1], [], []>} : vector<136x36xf32>, vector<36x4xf32>, vector<136x4xf32> -> vector<136x4xf32>
    %c0_12 = arith.constant 0 : index
    %c0_13 = arith.constant 0 : index
    %32 = vector.load %arg3[%c0_12, %c0_13] : memref<36x4xf32, #tpu.memory_space<vmem>>, vector<36x4xf32>
    %cst_14 = arith.constant dense<0.000000e+00> : vector<136x4xf32>
    %33 = tpu.matmul %29, %32, %cst_14 {dimension_numbers = #tpu.dot_dimension_numbers<[1], [0], [0], [1], [0, 0, 1, 1], [], []>} : vector<136x36xf32>, vector<36x4xf32>, vector<136x4xf32> -> vector<136x4xf32>
    %c0_15 = arith.constant 0 : index
    %34 = memref.load %arg6[%c0_15] : memref<1xf32, #tpu.memory_space<smem>>
    %cst_16 = arith.constant 0.000000e+00 : f32
    %35 = vector.broadcast %cst_16 : f32 to vector<136x4xf32>
    %36 = arith.cmpf ogt, %31, %35 : vector<136x4xf32>
    %37 = vector.broadcast %34 : f32 to vector<136x4xf32>
    %38 = arith.mulf %37, %31 : vector<136x4xf32>
    %39 = arith.select %36, %31, %38 : vector<136x4xi1>, vector<136x4xf32>
    %40 = vector.shape_cast %39 : vector<136x4xf32> to vector<17x8x4xf32>
    %cst_17 = arith.constant 0.000000e+00 : f32
    %41 = vector.broadcast %cst_17 : f32 to vector<136x4xf32>
    %42 = arith.cmpf ogt, %33, %41 : vector<136x4xf32>
    %43 = vector.broadcast %34 : f32 to vector<136x4xf32>
    %44 = arith.mulf %43, %33 : vector<136x4xf32>
    %45 = arith.select %42, %33, %44 : vector<136x4xi1>, vector<136x4xf32>
    %46 = vector.shape_cast %45 : vector<136x4xf32> to vector<17x8x4xf32>
    %47 = vector.extract_strided_slice %40 {offsets = [0, 0, 0], sizes = [16, 8, 4], strides = [1, 1, 1]} : vector<17x8x4xf32> to vector<16x8x4xf32>
    %48 = vector.shape_cast %47 : vector<16x8x4xf32> to vector<8x2x8x4xf32>
    %49 = vector.extract_strided_slice %40 {offsets = [1, 0, 0], sizes = [16, 8, 4], strides = [1, 1, 1]} : vector<17x8x4xf32> to vector<16x8x4xf32>
    %50 = vector.shape_cast %49 : vector<16x8x4xf32> to vector<8x2x8x4xf32>
    %51 = vector.extract_strided_slice %46 {offsets = [0, 0, 0], sizes = [16, 8, 4], strides = [1, 1, 1]} : vector<17x8x4xf32> to vector<16x8x4xf32>
    %52 = vector.shape_cast %51 : vector<16x8x4xf32> to vector<8x2x8x4xf32>
    %53 = vector.extract_strided_slice %46 {offsets = [1, 0, 0], sizes = [16, 8, 4], strides = [1, 1, 1]} : vector<17x8x4xf32> to vector<16x8x4xf32>
    %54 = vector.shape_cast %53 : vector<16x8x4xf32> to vector<8x2x8x4xf32>
    %c0_i32 = arith.constant 0 : i32
    %55 = arith.cmpi eq, %arg1, %c0_i32 : i32
    %56 = vector.extract_strided_slice %50 {offsets = [0, 1, 0, 0], sizes = [1, 1, 8, 4], strides = [1, 1, 1, 1]} : vector<8x2x8x4xf32> to vector<1x1x8x4xf32>
    %57 = vector.shape_cast %56 : vector<1x1x8x4xf32> to vector<8x4xf32>
    %58 = vector.extract_strided_slice %48 {offsets = [0, 0, 0, 0], sizes = [1, 1, 8, 4], strides = [1, 1, 1, 1]} : vector<8x2x8x4xf32> to vector<1x1x8x4xf32>
    %59 = vector.shape_cast %58 : vector<1x1x8x4xf32> to vector<8x4xf32>
    %60 = arith.select %55, %57, %59 : vector<8x4xf32>
    %61 = vector.shape_cast %60 : vector<8x4xf32> to vector<1x8x4xf32>
    %62 = vector.extract_strided_slice %48 {offsets = [1, 0, 0, 0], sizes = [7, 1, 8, 4], strides = [1, 1, 1, 1]} : vector<8x2x8x4xf32> to vector<7x1x8x4xf32>
    %63 = vector.shape_cast %62 : vector<7x1x8x4xf32> to vector<7x8x4xf32>
    %64 = tpu.concatenate %61, %63 in 0 : vector<1x8x4xf32>, vector<7x8x4xf32> -> vector<8x8x4xf32>
    %65 = vector.extract_strided_slice %54 {offsets = [0, 1, 0, 0], sizes = [1, 1, 8, 4], strides = [1, 1, 1, 1]} : vector<8x2x8x4xf32> to vector<1x1x8x4xf32>
    %66 = vector.shape_cast %65 : vector<1x1x8x4xf32> to vector<8x4xf32>
    %67 = vector.extract_strided_slice %52 {offsets = [0, 0, 0, 0], sizes = [1, 1, 8, 4], strides = [1, 1, 1, 1]} : vector<8x2x8x4xf32> to vector<1x1x8x4xf32>
    %68 = vector.shape_cast %67 : vector<1x1x8x4xf32> to vector<8x4xf32>
    %69 = arith.select %55, %66, %68 : vector<8x4xf32>
    %70 = vector.shape_cast %69 : vector<8x4xf32> to vector<1x8x4xf32>
    %71 = vector.extract_strided_slice %52 {offsets = [1, 0, 0, 0], sizes = [7, 1, 8, 4], strides = [1, 1, 1, 1]} : vector<8x2x8x4xf32> to vector<7x1x8x4xf32>
    %72 = vector.shape_cast %71 : vector<7x1x8x4xf32> to vector<7x8x4xf32>
    %73 = tpu.concatenate %70, %72 in 0 : vector<1x8x4xf32>, vector<7x8x4xf32> -> vector<8x8x4xf32>
    %74 = vector.extract_strided_slice %50 {offsets = [0, 0, 0, 0], sizes = [8, 1, 8, 4], strides = [1, 1, 1, 1]} : vector<8x2x8x4xf32> to vector<8x1x8x4xf32>
    %75 = vector.shape_cast %74 : vector<8x1x8x4xf32> to vector<8x8x4xf32>
    %76 = vector.extract_strided_slice %50 {offsets = [0, 1, 0, 0], sizes = [8, 1, 8, 4], strides = [1, 1, 1, 1]} : vector<8x2x8x4xf32> to vector<8x1x8x4xf32>
    %77 = vector.shape_cast %76 : vector<8x1x8x4xf32> to vector<8x8x4xf32>
    %78 = tpu.concatenate %64, %75, %77 in 2 : vector<8x8x4xf32>, vector<8x8x4xf32>, vector<8x8x4xf32> -> vector<8x8x12xf32>
    %79 = vector.shape_cast %78 : vector<8x8x12xf32> to vector<64x12xf32>
    %80 = vector.extract_strided_slice %54 {offsets = [0, 0, 0, 0], sizes = [8, 1, 8, 4], strides = [1, 1, 1, 1]} : vector<8x2x8x4xf32> to vector<8x1x8x4xf32>
    %81 = vector.shape_cast %80 : vector<8x1x8x4xf32> to vector<8x8x4xf32>
    %82 = vector.extract_strided_slice %54 {offsets = [0, 1, 0, 0], sizes = [8, 1, 8, 4], strides = [1, 1, 1, 1]} : vector<8x2x8x4xf32> to vector<8x1x8x4xf32>
    %83 = vector.shape_cast %82 : vector<8x1x8x4xf32> to vector<8x8x4xf32>
    %84 = tpu.concatenate %73, %81, %83 in 2 : vector<8x8x4xf32>, vector<8x8x4xf32>, vector<8x8x4xf32> -> vector<8x8x12xf32>
    %85 = vector.shape_cast %84 : vector<8x8x12xf32> to vector<64x12xf32>
    %c0_18 = arith.constant 0 : index
    %c0_19 = arith.constant 0 : index
    %86 = vector.load %arg4[%c0_18, %c0_19] : memref<12x8xf32, #tpu.memory_space<vmem>>, vector<12x8xf32>
    %cst_20 = arith.constant dense<0.000000e+00> : vector<64x8xf32>
    %87 = tpu.matmul %79, %86, %cst_20 {dimension_numbers = #tpu.dot_dimension_numbers<[1], [0], [0], [1], [0, 0, 1, 1], [], []>} : vector<64x12xf32>, vector<12x8xf32>, vector<64x8xf32> -> vector<64x8xf32>
    %c0_21 = arith.constant 0 : index
    %c0_22 = arith.constant 0 : index
    %88 = vector.load %arg5[%c0_21, %c0_22] : memref<12x16xf32, #tpu.memory_space<vmem>>, vector<12x16xf32>
    %cst_23 = arith.constant dense<0.000000e+00> : vector<64x16xf32>
    %89 = tpu.matmul %85, %88, %cst_23 {dimension_numbers = #tpu.dot_dimension_numbers<[1], [0], [0], [1], [0, 0, 1, 1], [], []>} : vector<64x12xf32>, vector<12x16xf32>, vector<64x16xf32> -> vector<64x16xf32>
    %90 = vector.extract_strided_slice %89 {offsets = [0, 0], sizes = [64, 8], strides = [1, 1]} : vector<64x16xf32> to vector<64x8xf32>
    %91 = vector.extract_strided_slice %89 {offsets = [0, 8], sizes = [64, 8], strides = [1, 1]} : vector<64x16xf32> to vector<64x8xf32>
    %c1_i32 = arith.constant 1 : i32
    %92 = tpu.dynamic_rotate %90 by %c1_i32 dim 0 : vector<64x8xf32>, i32 -> vector<64x8xf32>
    %93 = tpu.iota {dimensions = array<i32: 1>} : vector<8x8x8xi32>
    %94 = vector.shape_cast %93 : vector<8x8x8xi32> to vector<64x8xi32>
    %c0_i32_24 = arith.constant 0 : i32
    %95 = vector.broadcast %c0_i32_24 : i32 to vector<64x8xi32>
    %96 = arith.cmpi eq, %94, %95 : vector<64x8xi32>
    %97 = arith.select %96, %90, %92 : vector<64x8xi1>, vector<64x8xf32>
    %98 = arith.addf %97, %87 : vector<64x8xf32>
    %99 = arith.addf %98, %91 : vector<64x8xf32>
    %100 = vector.shape_cast %99 : vector<64x8xf32> to vector<8x8x8xf32>
    %c0_25 = arith.constant 0 : index
    %c0_26 = arith.constant 0 : index
    %c0_27 = arith.constant 0 : index
    %c0_28 = arith.constant 0 : index
    %101 = vector.load %arg7[%c0_25, %c0_26, %c0_27, %c0_28] : memref<1x8x8x8xf32, #tpu.memory_space<vmem>>, vector<1x8x8x8xf32>
    %102 = vector.shape_cast %101 : vector<1x8x8x8xf32> to vector<8x8x8xf32>
    %103 = vector.shape_cast %100 : vector<8x8x8xf32> to vector<1x8x8x8xf32>
    tpu.vector_store %arg7[%c0_25, %c0_26, %c0_27, %c0_28], %103 {strides = array<i32>} : memref<1x8x8x8xf32, #tpu.memory_space<vmem>>, vector<1x8x8x8xf32>,
    return
  }
  func.func @transform_0(%arg0: i32, %arg1: i32) -> (i32, i32, i32, i32, i32, i32) {
    %c0_i32 = arith.constant 0 : i32
    %c0_i32_0 = arith.constant 0 : i32
    %c0_i32_1 = arith.constant 0 : i32
    %c0_i32_2 = arith.constant 0 : i32
    %c0_i32_3 = arith.constant 0 : i32
    return %arg0, %arg1, %c0_i32, %c0_i32_0, %c0_i32_1, %c0_i32_2 : i32, i32, i32, i32, i32, i32
  }
  func.func @transform_1(%arg0: i32, %arg1: i32) -> (i32, i32) {
    %c0_i32 = arith.constant 0 : i32
    %c0_i32_0 = arith.constant 0 : i32
    %c0_i32_1 = arith.constant 0 : i32
    return %c0_i32, %c0_i32_0 : i32, i32
  }
  func.func @transform_2(%arg0: i32, %arg1: i32) -> (i32, i32) {
    %c0_i32 = arith.constant 0 : i32
    %c0_i32_0 = arith.constant 0 : i32
    %c0_i32_1 = arith.constant 0 : i32
    return %c0_i32, %c0_i32_0 : i32, i32
  }
  func.func @transform_3(%arg0: i32, %arg1: i32) -> (i32, i32) {
    %c0_i32 = arith.constant 0 : i32
    %c0_i32_0 = arith.constant 0 : i32
    %c0_i32_1 = arith.constant 0 : i32
    return %c0_i32, %c0_i32_0 : i32, i32
  }
  func.func @transform_4(%arg0: i32, %arg1: i32) -> i32 {
    %c0_i32 = arith.constant 0 : i32
    %c0_i32_0 = arith.constant 0 : i32
    return %c0_i32 : i32
  }
  func.func @transform_5(%arg0: i32, %arg1: i32) -> (i32, i32, i32, i32) {
    %c0_i32 = arith.constant 0 : i32
    %c0_i32_0 = arith.constant 0 : i32
    %c0_i32_1 = arith.constant 0 : i32
    return %arg0, %arg1, %c0_i32, %c0_i32_0 : i32, i32, i32, i32
  }
}

</mosaic_0001>

<llo_original>
// kernel: downsample_forward.1
$region0: #{downsample_forward.1}
  #allocation0 [shape = 'u32[]', space=smem, size = 0x4, offset = 0x4, fixed_abs, tag = 'smem constant byte address 0x4 - core index']
  #allocation1 [shape = 'u32[144,128]{1,0:T(1,128)}', space=vmem, size = 0x12000, scoped, tag = 'internal scratch']
  #allocation2 [shape = 'f32[1]{0:T(128)S(6)}', space=smem, size = 0x200, scoped, tag = 'scoped memory for downsample_forward.1']
  %s0 = inlined_call_operand.vmem [shape: f32[2,1,2,19,9,4], index: 0, kind: input, shape index: {}]
  %s1 = inlined_call_operand.vmem [shape: f32[36,4], index: 1, kind: input, shape index: {}]
  %s2 = inlined_call_operand.vmem [shape: f32[12,8], index: 2, kind: input, shape index: {}]
  %s3 = inlined_call_operand.vmem [shape: f32[12,16], index: 3, kind: input, shape index: {}]
  %s4 = inlined_call_operand.<no memory space> [shape: f32[1], index: 4, kind: input, shape index: {}]
  %s5 = inlined_call_operand.vmem [shape: f32[2,8,8,8], index: 5, kind: output, shape index: {}]
  %s6 = sld [smem:[#allocation0]]
  $region53: #{downsample_forward.1} parent=0
    _
  %s8 = ssub.s32 1, %s6
  %s9 = scalar_select 0, %s8, %s6
  %10 = sst [smem:[#allocation2]] %s4
  loop: start=0, step=1, limit=4
  $region2: #{downsample_forward.1} parent=0 // loop_pre_header
    _
  $region3: #{downsample_forward.1} parent=0 // loop_header
    %s12 = sphi 0, %s16
    %p13 = scmp.ge.s32.totalorder %s12, 4
    %s19 = sphi 0, %s31
    %s20 = sphi 0, %s27
    %s21 = sphi 0, %s19
    %s22 = sphi 0, %s20
    %s23 = sphi 0, %s21
    %s24 = sphi 0, %s22
    %s36 = sphi 0, %s38
    %s39 = sphi 0, %s36
    %s40 = sphi 0, %s39
    %s56 = sphi 0, %s40
    %s60 = sphi 0, %s60
    %s62 = sphi 0, %s60
    %s63 = sphi 0, %s62
    %s77 = sphi 0, %s63
    %s81 = sphi 0, %s81
    %s83 = sphi 0, %s81
    %s84 = sphi 0, %s83
    %s98 = sphi 0, %s84
    %s102 = sphi 0, %s102
    %s104 = sphi 0, %s102
    %s105 = sphi 0, %s104
    %s119 = sphi 0, %s105
    %s123 = sphi 0, %s123
    %s125 = sphi 0, %s123
    %s126 = sphi 0, %s125
    %s140 = sphi 0, %s126
    %s148 = sphi 0, %s150
    %s151 = sphi 0, %s148
    %s152 = sphi 0, %s151
    %s168 = sphi 0, %s152
  $region4: #{downsample_forward.1} parent=0 // loop_header_branch
    %15 = sbr.rel (%p13) target = $region8
  $region5: #{downsample_forward.1} parent=0 // loop_body
    %s17 = ssub.s32 %s12, 1
    %s18 = ssub.s32 %s12, 2
    %s25 = sadd.s32 1, %s20
    %p26 = scmp.ge.s32.totalorder %s25, 1
    %s27 = scalar_select %p26, 0, %s25
    %s28 = sadd.s32 1, %s19
    %s29 = scalar_select %p26, %s28, %s19
    %p30 = scmp.ge.s32.totalorder %s29, 2
    %s31 = scalar_select %p30, 0, %s29
    %s32 = ssub.s32 %s19, %s31
    %s33 = ssub.s32 %s20, %s27
    %s34 = sor.u32 %s32, %s33
    %p35 = scmp.eq.s32.totalorder %s34, 0
    %s37 = sadd.s32 %s36, 1
    %s38 = scalar_select %p35, %s36, %s37
    %p41 = pneg %p35
    %p42 = scmp.eq.s32.totalorder %s12, 1
    %p43 = por %p41, %p42
    %p44 = scmp.ne.s32.totalorder %s36, %s39
    %p45 = scmp.eq.s32.totalorder %s12, 0
    %p46 = por %p44, %p45
    %p47 = scmp.ne.s32.totalorder %s36, %s39
    %p48 = scmp.eq.s32.totalorder %s17, 1
    %p49 = por %p47, %p48
    %p50 = scmp.ne.s32.totalorder %s39, %s40
    %p51 = scmp.eq.s32.totalorder %s17, 0
    %p52 = por %p50, %p51
    %p53 = scmp.ne.s32.totalorder %s39, %s40
    %p54 = scmp.eq.s32.totalorder %s18, 1
    %p55 = por %p53, %p54
    %p57 = scmp.ne.s32.totalorder %s40, %s56
    %p58 = scmp.eq.s32.totalorder %s18, 0
    %p59 = por %p57, %p58
    %s61 = sadd.s32 %s60, 1
    %p64 = scmp.eq.s32.totalorder %s12, 1
    %p65 = scmp.ne.s32.totalorder %s60, %s62
    %p66 = scmp.eq.s32.totalorder %s12, 0
    %p67 = por %p65, %p66
    %p68 = scmp.ne.s32.totalorder %s60, %s62
    %p69 = scmp.eq.s32.totalorder %s17, 1
    %p70 = por %p68, %p69
    %p71 = scmp.ne.s32.totalorder %s62, %s63
    %p72 = scmp.eq.s32.totalorder %s17, 0
    %p73 = por %p71, %p72
    %p74 = scmp.ne.s32.totalorder %s62, %s63
    %p75 = scmp.eq.s32.totalorder %s18, 1
    %p76 = por %p74, %p75
    %p78 = scmp.ne.s32.totalorder %s63, %s77
    %p79 = scmp.eq.s32.totalorder %s18, 0
    %p80 = por %p78, %p79
    %s82 = sadd.s32 %s81, 1
    %p85 = scmp.eq.s32.totalorder %s12, 1
    %p86 = scmp.ne.s32.totalorder %s81, %s83
    %p87 = scmp.eq.s32.totalorder %s12, 0
    %p88 = por %p86, %p87
    %p89 = scmp.ne.s32.totalorder %s81, %s83
    %p90 = scmp.eq.s32.totalorder %s17, 1
    %p91 = por %p89, %p90
    %p92 = scmp.ne.s32.totalorder %s83, %s84
    %p93 = scmp.eq.s32.totalorder %s17, 0
    %p94 = por %p92, %p93
    %p95 = scmp.ne.s32.totalorder %s83, %s84
    %p96 = scmp.eq.s32.totalorder %s18, 1
    %p97 = por %p95, %p96
    %p99 = scmp.ne.s32.totalorder %s84, %s98
    %p100 = scmp.eq.s32.totalorder %s18, 0
    %p101 = por %p99, %p100
    %s103 = sadd.s32 %s102, 1
    %p106 = scmp.eq.s32.totalorder %s12, 1
    %p107 = scmp.ne.s32.totalorder %s102, %s104
    %p108 = scmp.eq.s32.totalorder %s12, 0
    %p109 = por %p107, %p108
    %p110 = scmp.ne.s32.totalorder %s102, %s104
    %p111 = scmp.eq.s32.totalorder %s17, 1
    %p112 = por %p110, %p111
    %p113 = scmp.ne.s32.totalorder %s104, %s105
    %p114 = scmp.eq.s32.totalorder %s17, 0
    %p115 = por %p113, %p114
    %p116 = scmp.ne.s32.totalorder %s104, %s105
    %p117 = scmp.eq.s32.totalorder %s18, 1
    %p118 = por %p116, %p117
    %p120 = scmp.ne.s32.totalorder %s105, %s119
    %p121 = scmp.eq.s32.totalorder %s18, 0
    %p122 = por %p120, %p121
    %s124 = sadd.s32 %s123, 1
    %p127 = scmp.eq.s32.totalorder %s12, 1
    %p128 = scmp.ne.s32.totalorder %s123, %s125
    %p129 = scmp.eq.s32.totalorder %s12, 0
    %p130 = por %p128, %p129
    %p131 = scmp.ne.s32.totalorder %s123, %s125
    %p132 = scmp.eq.s32.totalorder %s17, 1
    %p133 = por %p131, %p132
    %p134 = scmp.ne.s32.totalorder %s125, %s126
    %p135 = scmp.eq.s32.totalorder %s17, 0
    %p136 = por %p134, %p135
    %p137 = scmp.ne.s32.totalorder %s125, %s126
    %p138 = scmp.eq.s32.totalorder %s18, 1
    %p139 = por %p137, %p138
    %p141 = scmp.ne.s32.totalorder %s126, %s140
    %p142 = scmp.eq.s32.totalorder %s18, 0
    %p143 = por %p141, %p142
    %s144 = ssub.s32 %s19, %s31
    %s145 = ssub.s32 %s20, %s27
    %s146 = sor.u32 %s144, %s145
    %p147 = scmp.eq.s32.totalorder %s146, 0
    %s149 = sadd.s32 %s148, 1
    %s150 = scalar_select %p147, %s148, %s149
    %p153 = pneg %p147
    %p154 = scmp.eq.s32.totalorder %s12, 1
    %p155 = por %p153, %p154
    %p156 = scmp.ne.s32.totalorder %s148, %s151
    %p157 = scmp.eq.s32.totalorder %s12, 0
    %p158 = por %p156, %p157
    %p159 = scmp.ne.s32.totalorder %s148, %s151
    %p160 = scmp.eq.s32.totalorder %s17, 1
    %p161 = por %p159, %p160
    %p162 = scmp.ne.s32.totalorder %s151, %s152
    %p163 = scmp.eq.s32.totalorder %s17, 0
    %p164 = por %p162, %p163
    %p165 = scmp.ne.s32.totalorder %s151, %s152
    %p166 = scmp.eq.s32.totalorder %s18, 1
    %p167 = por %p165, %p166
    %p169 = scmp.ne.s32.totalorder %s152, %s168
    %p170 = scmp.eq.s32.totalorder %s18, 0
    %p171 = por %p169, %p170
    %p172 = scmp.le.s32.totalorder 1, %s12
    %p173 = scmp.lt.s32.totalorder %s12, 3
    %p174 = pnand %p172, %p173
    %p175 = pneg %p174
    // Predicated region
    $region9: #{downsample_forward.1} parent=5 // pred_check
      _
    $region10: #{downsample_forward.1} parent=5 // pred_check_branch
      %177 = sbr.rel (%p174) target = $region12
    $region11: #{downsample_forward.1} parent=5 // pred_region
      %s178 = ssub.s32 %s12, 1
      // Predicated region
      $region13: #{downsample_forward.1} parent=11 // pred_check
        %p179 = pneg %p73
      $region14: #{downsample_forward.1} parent=11 // pred_check_branch
        %181 = sbr.rel (%p179) target = $region16
      $region15: #{downsample_forward.1} parent=11 // pred_region
        _
      $region16: #{downsample_forward.1} parent=11 // pred_fallthru
        _
      // Predicated region
      $region17: #{downsample_forward.1} parent=11 // pred_check
        %p182 = pneg %p94
      $region18: #{downsample_forward.1} parent=11 // pred_check_branch
        %184 = sbr.rel (%p182) target = $region20
      $region19: #{downsample_forward.1} parent=11 // pred_region
        _
      $region20: #{downsample_forward.1} parent=11 // pred_fallthru
        _
      // Predicated region
      $region21: #{downsample_forward.1} parent=11 // pred_check
        %p185 = pneg %p115
      $region22: #{downsample_forward.1} parent=11 // pred_check_branch
        %187 = sbr.rel (%p185) target = $region24
      $region23: #{downsample_forward.1} parent=11 // pred_region
        _
      $region24: #{downsample_forward.1} parent=11 // pred_fallthru
        _
      // Predicated region
      $region25: #{downsample_forward.1} parent=11 // pred_check
        %p188 = pneg %p136
      $region26: #{downsample_forward.1} parent=11 // pred_check_branch
        %190 = sbr.rel (%p188) target = $region28
      $region27: #{downsample_forward.1} parent=11 // pred_region
        _
      $region28: #{downsample_forward.1} parent=11 // pred_fallthru
        _
    $region12: #{downsample_forward.1} parent=5 // pred_fallthru
      _
    %p191 = scmp.lt.s32.totalorder %s12, 2
    // Predicated region
    $region29: #{downsample_forward.1} parent=5 // pred_check
      %p192 = pneg %p191
    $region30: #{downsample_forward.1} parent=5 // pred_check_branch
      %194 = sbr.rel (%p192) target = $region32
    $region31: #{downsample_forward.1} parent=5 // pred_region
      // Predicated region
      $region33: #{downsample_forward.1} parent=31 // pred_check
        %p195 = pneg %p46
      $region34: #{downsample_forward.1} parent=31 // pred_check_branch
        %197 = sbr.rel (%p195) target = $region36
      $region35: #{downsample_forward.1} parent=31 // pred_region
        %p198 = scmp.lt.s32.totalorder %s19, 1
        %s199 = scalar_select %p198, %s19, 1
        %p200 = scmp.lt.s32.totalorder %s20, 0
        %s201 = scalar_select %p200, %s20, 0
        %s202 = smul.addr %s201, 76
        %s203 = smul.addr %s199, 76
        %s204 = sadd.s32 %s202, %s203
        %s205 = smul.addr %s204, 8
        %s206 = scalar_lea.vmem %s0, %s205
      $region36: #{downsample_forward.1} parent=31 // pred_fallthru
        _
    $region32: #{downsample_forward.1} parent=5 // pred_fallthru
      _
    %p207 = scmp.le.s32.totalorder 1, %s12
    %p208 = scmp.lt.s32.totalorder %s12, 3
    %p209 = pnand %p207, %p208
    %p210 = pneg %p209
    // Predicated region
    $region37: #{downsample_forward.1} parent=5 // pred_check
      _
    $region38: #{downsample_forward.1} parent=5 // pred_check_branch
      %212 = sbr.rel (%p209) target = $region40
    $region39: #{downsample_forward.1} parent=5 // pred_region
      %s213 = ssub.s32 %s12, 1
      %p214 = scmp.lt.s32.totalorder %s21, 1
      %s215 = scalar_select %p214, %s21, 1
      %p216 = scmp.lt.s32.totalorder %s22, 0
      %s217 = scalar_select %p216, %s22, 0
      %s218 = smul.addr %s217, 76
      %s219 = smul.addr %s215, 76
      %s220 = sadd.s32 %s218, %s219
      %s221 = smul.addr %s220, 8
      %s222 = scalar_lea.vmem %s0, %s221
      %p223 = pneg %p52
      %p224 = pneg %p49
      %p225 = pneg %p73
      %p226 = pneg %p70
      %p227 = pneg %p94
      %p228 = pneg %p91
      %p229 = pneg %p115
      %p230 = pneg %p112
      %p231 = pneg %p136
      %p232 = pneg %p133
      %p233 = pneg %p164
      %p234 = pneg %p161
      %s235 = smul.u32 8, %s22
      %p236 = scmp.lt.s32.totalorder %s21, 1
      %s237 = scalar_select %p236, %s21, 1
      %p238 = scmp.lt.s32.totalorder %s235, 7
      %s239 = scalar_select %p238, %s235, 7
      %s240 = smul.addr %s237, 8
      %s241 = sadd.s32 %s239, %s240
      %s242 = smul.addr %s241, 8
      %s243 = scalar_lea.vmem %s5, %s242
      %p244 = scmp.lt.s32.totalorder %s21, 1
      %s245 = scalar_select %p244, %s21, 1
      %p246 = scmp.lt.s32.totalorder %s22, 0
      %s247 = scalar_select %p246, %s22, 0
      %s248 = smul.addr %s247, 76
      %s249 = smul.addr %s245, 76
      %s250 = sadd.s32 %s248, %s249
      %s251 = smul.addr %s250, 8
      %s252 = scalar_lea.vmem %s0, %s251
      %s253 = smul.u32 8, %s22
      %p254 = scmp.lt.s32.totalorder %s21, 1
      %s255 = scalar_select %p254, %s21, 1
      %p256 = scmp.lt.s32.totalorder %s253, 7
      %s257 = scalar_select %p256, %s253, 7
      %s258 = smul.addr %s255, 8
      %s259 = sadd.s32 %s257, %s258
      %s260 = smul.addr %s259, 8
      %s261 = scalar_lea.vmem %s5, %s260
      %s262 = smul.u32 8, %s22
      %v263 = vld [vmem:[%s252] sm:$0xff]
      %v264 = vld [vmem:[%s252 + $0x8] sm:$0x1]
      %v265 = vld [vmem:[%s252 + $0x10] sm:$0xff]
      %v266 = vld [vmem:[%s252 + $0x18] sm:$0x1]
      %v267 = vld [vmem:[%s252 + $0x20] sm:$0xff]
      %v268 = vld [vmem:[%s252 + $0x28] sm:$0x1]
      %v269 = vld [vmem:[%s252 + $0x30] sm:$0xff]
      %v270 = vld [vmem:[%s252 + $0x38] sm:$0x1]
      %v271 = vld [vmem:[%s252 + $0x40] sm:$0xff]
      %v272 = vld [vmem:[%s252 + $0x48] sm:$0x1]
      %v273 = vld [vmem:[%s252 + $0x50] sm:$0xff]
      %v274 = vld [vmem:[%s252 + $0x58] sm:$0x1]
      %v275 = vld [vmem:[%s252 + $0x60] sm:$0xff]
      %v276 = vld [vmem:[%s252 + $0x68] sm:$0x1]
      %v277 = vld [vmem:[%s252 + $0x70] sm:$0xff]
      %v278 = vld [vmem:[%s252 + $0x78] sm:$0x1]
      %v279 = vld [vmem:[%s252 + $0x80] sm:$0xff]
      %v280 = vld [vmem:[%s252 + $0x88] sm:$0x1]
      %v281 = vld [vmem:[%s252 + $0x90] sm:$0xff]
      %v282 = vld [vmem:[%s252 + $0x98] sm:$0x1]
      %v283 = vld [vmem:[%s252 + $0xa0] sm:$0xff]
      %v284 = vld [vmem:[%s252 + $0xa8] sm:$0x1]
      %v285 = vld [vmem:[%s252 + $0xb0] sm:$0xff]
      %v286 = vld [vmem:[%s252 + $0xb8] sm:$0x1]
      %v287 = vld [vmem:[%s252 + $0xc0] sm:$0xff]
      %v288 = vld [vmem:[%s252 + $0xc8] sm:$0x1]
      %v289 = vld [vmem:[%s252 + $0xd0] sm:$0xff]
      %v290 = vld [vmem:[%s252 + $0xd8] sm:$0x1]
      %v291 = vld [vmem:[%s252 + $0xe0] sm:$0xff]
      %v292 = vld [vmem:[%s252 + $0xe8] sm:$0x1]
      %v293 = vld [vmem:[%s252 + $0xf0] sm:$0xff]
      %v294 = vld [vmem:[%s252 + $0xf8] sm:$0x1]
      %v295 = vld [vmem:[%s252 + $0x100] sm:$0xff]
      %v296 = vld [vmem:[%s252 + $0x108] sm:$0x1]
      %v297 = vld [vmem:[%s252 + $0x110] sm:$0xff]
      %v298 = vld [vmem:[%s252 + $0x118] sm:$0x1]
      %v299 = vld [vmem:[%s252 + $0x120] sm:$0xff]
      %v300 = vld [vmem:[%s252 + $0x128] sm:$0x1]
      %s301 = scalar_lea.vmem %s252, 304
      %v302 = vld [vmem:[%s301] sm:$0xff]
      %v303 = vld [vmem:[%s301 + $0x8] sm:$0x1]
      %v304 = vld [vmem:[%s301 + $0x10] sm:$0xff]
      %v305 = vld [vmem:[%s301 + $0x18] sm:$0x1]
      %v306 = vld [vmem:[%s301 + $0x20] sm:$0xff]
      %v307 = vld [vmem:[%s301 + $0x28] sm:$0x1]
      %v308 = vld [vmem:[%s301 + $0x30] sm:$0xff]
      %v309 = vld [vmem:[%s301 + $0x38] sm:$0x1]
      %v310 = vld [vmem:[%s301 + $0x40] sm:$0xff]
      %v311 = vld [vmem:[%s301 + $0x48] sm:$0x1]
      %v312 = vld [vmem:[%s301 + $0x50] sm:$0xff]
      %v313 = vld [vmem:[%s301 + $0x58] sm:$0x1]
      %v314 = vld [vmem:[%s301 + $0x60] sm:$0xff]
      %v315 = vld [vmem:[%s301 + $0x68] sm:$0x1]
      %v316 = vld [vmem:[%s301 + $0x70] sm:$0xff]
      %v317 = vld [vmem:[%s301 + $0x78] sm:$0x1]
      %v318 = vld [vmem:[%s301 + $0x80] sm:$0xff]
      %v319 = vld [vmem:[%s301 + $0x88] sm:$0x1]
      %v320 = vld [vmem:[%s301 + $0x90] sm:$0xff]
      %v321 = vld [vmem:[%s301 + $0x98] sm:$0x1]
      %v322 = vld [vmem:[%s301 + $0xa0] sm:$0xff]
      %v323 = vld [vmem:[%s301 + $0xa8] sm:$0x1]
      %v324 = vld [vmem:[%s301 + $0xb0] sm:$0xff]
      %v325 = vld [vmem:[%s301 + $0xb8] sm:$0x1]
      %v326 = vld [vmem:[%s301 + $0xc0] sm:$0xff]
      %v327 = vld [vmem:[%s301 + $0xc8] sm:$0x1]
      %v328 = vld [vmem:[%s301 + $0xd0] sm:$0xff]
      %v329 = vld [vmem:[%s301 + $0xd8] sm:$0x1]
      %v330 = vld [vmem:[%s301 + $0xe0] sm:$0xff]
      %v331 = vld [vmem:[%s301 + $0xe8] sm:$0x1]
      %v332 = vld [vmem:[%s301 + $0xf0] sm:$0xff]
      %v333 = vld [vmem:[%s301 + $0xf8] sm:$0x1]
      %v334 = vld [vmem:[%s301 + $0x100] sm:$0xff]
      %v335 = vld [vmem:[%s301 + $0x108] sm:$0x1]
      %v336 = vld [vmem:[%s301 + $0x110] sm:$0xff]
      %v337 = vld [vmem:[%s301 + $0x118] sm:$0x1]
      %v338 = vld [vmem:[%s301 + $0x120] sm:$0xff]
      %v339 = vld [vmem:[%s301 + $0x128] sm:$0x1]
      %357 = vrot.lane.b32.xlu0 %v302, 4
      %v358 = vpop.permute.xlu0 %357
      %359 = vrot.lane.b32.xlu0 %v304, 4
      %v360 = vpop.permute.xlu0 %359
      %361 = vrot.lane.b32.xlu0 %v306, 4
      %v362 = vpop.permute.xlu0 %361
      %363 = vrot.lane.b32.xlu0 %v308, 4
      %v364 = vpop.permute.xlu0 %363
      %365 = vrot.lane.b32.xlu0 %v310, 4
      %v366 = vpop.permute.xlu0 %365
      %367 = vrot.lane.b32.xlu0 %v312, 4
      %v368 = vpop.permute.xlu0 %367
      %369 = vrot.lane.b32.xlu0 %v314, 4
      %v370 = vpop.permute.xlu0 %369
      %371 = vrot.lane.b32.xlu0 %v316, 4
      %v372 = vpop.permute.xlu0 %371
      %373 = vrot.lane.b32.xlu0 %v318, 4
      %v374 = vpop.permute.xlu0 %373
      %375 = vrot.lane.b32.xlu0 %v320, 4
      %v376 = vpop.permute.xlu0 %375
      %377 = vrot.lane.b32.xlu0 %v322, 4
      %v378 = vpop.permute.xlu0 %377
      %379 = vrot.lane.b32.xlu0 %v324, 4
      %v380 = vpop.permute.xlu0 %379
      %381 = vrot.lane.b32.xlu0 %v326, 4
      %v382 = vpop.permute.xlu0 %381
      %383 = vrot.lane.b32.xlu0 %v328, 4
      %v384 = vpop.permute.xlu0 %383
      %385 = vrot.lane.b32.xlu0 %v330, 4
      %v386 = vpop.permute.xlu0 %385
      %387 = vrot.lane.b32.xlu0 %v332, 4
      %v388 = vpop.permute.xlu0 %387
      %389 = vrot.lane.b32.xlu0 %v334, 4
      %v390 = vpop.permute.xlu0 %389
      %vm442 = vcmask 1046528
      %v443 = vrot.slane %v263, 1
      %v444 = vrot.slane %v264, 1
      %v445 = vsel %vm442, %v443, %v444
      %v446 = vrot.slane %v265, 1
      %v447 = vrot.slane %v266, 1
      %v448 = vsel %vm442, %v446, %v447
      %v449 = vrot.slane %v267, 1
      %v450 = vrot.slane %v268, 1
      %v451 = vsel %vm442, %v449, %v450
      %v452 = vrot.slane %v269, 1
      %v453 = vrot.slane %v270, 1
      %v454 = vsel %vm442, %v452, %v453
      %v455 = vrot.slane %v271, 1
      %v456 = vrot.slane %v272, 1
      %v457 = vsel %vm442, %v455, %v456
      %v458 = vrot.slane %v273, 1
      %v459 = vrot.slane %v274, 1
      %v460 = vsel %vm442, %v458, %v459
      %v461 = vrot.slane %v275, 1
      %v462 = vrot.slane %v276, 1
      %v463 = vsel %vm442, %v461, %v462
      %v464 = vrot.slane %v277, 1
      %v465 = vrot.slane %v278, 1
      %v466 = vsel %vm442, %v464, %v465
      %v467 = vrot.slane %v279, 1
      %v468 = vrot.slane %v280, 1
      %v469 = vsel %vm442, %v467, %v468
      %v470 = vrot.slane %v281, 1
      %v471 = vrot.slane %v282, 1
      %v472 = vsel %vm442, %v470, %v471
      %v473 = vrot.slane %v283, 1
      %v474 = vrot.slane %v284, 1
      %v475 = vsel %vm442, %v473, %v474
      %v476 = vrot.slane %v285, 1
      %v477 = vrot.slane %v286, 1
      %v478 = vsel %vm442, %v476, %v477
      %v479 = vrot.slane %v287, 1
      %v480 = vrot.slane %v288, 1
      %v481 = vsel %vm442, %v479, %v480
      %v482 = vrot.slane %v289, 1
      %v483 = vrot.slane %v290, 1
      %v484 = vsel %vm442, %v482, %v483
      %v485 = vrot.slane %v291, 1
      %v486 = vrot.slane %v292, 1
      %v487 = vsel %vm442, %v485, %v486
      %v488 = vrot.slane %v293, 1
      %v489 = vrot.slane %v294, 1
      %v490 = vsel %vm442, %v488, %v489
      %v491 = vrot.slane %v295, 1
      %v492 = vrot.slane %v296, 1
      %v493 = vsel %vm442, %v491, %v492
      %494 = vrot.lane.b32.xlu0 %v445, 8
      %v495 = vpop.permute.xlu0 %494
      %496 = vrot.lane.b32.xlu0 %v448, 8
      %v497 = vpop.permute.xlu0 %496
      %498 = vrot.lane.b32.xlu0 %v451, 8
      %v499 = vpop.permute.xlu0 %498
      %500 = vrot.lane.b32.xlu0 %v454, 8
      %v501 = vpop.permute.xlu0 %500
      %502 = vrot.lane.b32.xlu0 %v457, 8
      %v503 = vpop.permute.xlu0 %502
      %504 = vrot.lane.b32.xlu0 %v460, 8
      %v505 = vpop.permute.xlu0 %504
      %506 = vrot.lane.b32.xlu0 %v463, 8
      %v507 = vpop.permute.xlu0 %506
      %508 = vrot.lane.b32.xlu0 %v466, 8
      %v509 = vpop.permute.xlu0 %508
      %510 = vrot.lane.b32.xlu0 %v469, 8
      %v511 = vpop.permute.xlu0 %510
      %512 = vrot.lane.b32.xlu0 %v472, 8
      %v513 = vpop.permute.xlu0 %512
      %514 = vrot.lane.b32.xlu0 %v475, 8
      %v515 = vpop.permute.xlu0 %514
      %516 = vrot.lane.b32.xlu0 %v478, 8
      %v517 = vpop.permute.xlu0 %516
      %518 = vrot.lane.b32.xlu0 %v481, 8
      %v519 = vpop.permute.xlu0 %518
      %520 = vrot.lane.b32.xlu0 %v484, 8
      %v521 = vpop.permute.xlu0 %520
      %522 = vrot.lane.b32.xlu0 %v487, 8
      %v523 = vpop.permute.xlu0 %522
      %524 = vrot.lane.b32.xlu0 %v490, 8
      %v525 = vpop.permute.xlu0 %524
      %526 = vrot.lane.b32.xlu0 %v493, 8
      %v527 = vpop.permute.xlu0 %526
      %546 = vrot.lane.b32.xlu0 %v265, 12
      %v547 = vpop.permute.xlu0 %546
      %548 = vrot.lane.b32.xlu0 %v267, 12
      %v549 = vpop.permute.xlu0 %548
      %550 = vrot.lane.b32.xlu0 %v269, 12
      %v551 = vpop.permute.xlu0 %550
      %552 = vrot.lane.b32.xlu0 %v271, 12
      %v553 = vpop.permute.xlu0 %552
      %554 = vrot.lane.b32.xlu0 %v273, 12
      %v555 = vpop.permute.xlu0 %554
      %556 = vrot.lane.b32.xlu0 %v275, 12
      %v557 = vpop.permute.xlu0 %556
      %558 = vrot.lane.b32.xlu0 %v277, 12
      %v559 = vpop.permute.xlu0 %558
      %560 = vrot.lane.b32.xlu0 %v279, 12
      %v561 = vpop.permute.xlu0 %560
      %562 = vrot.lane.b32.xlu0 %v281, 12
      %v563 = vpop.permute.xlu0 %562
      %564 = vrot.lane.b32.xlu0 %v283, 12
      %v565 = vpop.permute.xlu0 %564
      %566 = vrot.lane.b32.xlu0 %v285, 12
      %v567 = vpop.permute.xlu0 %566
      %568 = vrot.lane.b32.xlu0 %v287, 12
      %v569 = vpop.permute.xlu0 %568
      %570 = vrot.lane.b32.xlu0 %v289, 12
      %v571 = vpop.permute.xlu0 %570
      %572 = vrot.lane.b32.xlu0 %v291, 12
      %v573 = vpop.permute.xlu0 %572
      %574 = vrot.lane.b32.xlu0 %v293, 12
      %v575 = vpop.permute.xlu0 %574
      %576 = vrot.lane.b32.xlu0 %v295, 12
      %v577 = vpop.permute.xlu0 %576
      %578 = vrot.lane.b32.xlu0 %v297, 12
      %v579 = vpop.permute.xlu0 %578
      %598 = vrot.lane.b32.xlu0 %v304, 16
      %v599 = vpop.permute.xlu0 %598
      %600 = vrot.lane.b32.xlu0 %v306, 16
      %v601 = vpop.permute.xlu0 %600
      %602 = vrot.lane.b32.xlu0 %v308, 16
      %v603 = vpop.permute.xlu0 %602
      %604 = vrot.lane.b32.xlu0 %v310, 16
      %v605 = vpop.permute.xlu0 %604
      %606 = vrot.lane.b32.xlu0 %v312, 16
      %v607 = vpop.permute.xlu0 %606
      %608 = vrot.lane.b32.xlu0 %v314, 16
      %v609 = vpop.permute.xlu0 %608
      %610 = vrot.lane.b32.xlu0 %v316, 16
      %v611 = vpop.permute.xlu0 %610
      %612 = vrot.lane.b32.xlu0 %v318, 16
      %v613 = vpop.permute.xlu0 %612
      %614 = vrot.lane.b32.xlu0 %v320, 16
      %v615 = vpop.permute.xlu0 %614
      %616 = vrot.lane.b32.xlu0 %v322, 16
      %v617 = vpop.permute.xlu0 %616
      %618 = vrot.lane.b32.xlu0 %v324, 16
      %v619 = vpop.permute.xlu0 %618
      %620 = vrot.lane.b32.xlu0 %v326, 16
      %v621 = vpop.permute.xlu0 %620
      %622 = vrot.lane.b32.xlu0 %v328, 16
      %v623 = vpop.permute.xlu0 %622
      %624 = vrot.lane.b32.xlu0 %v330, 16
      %v625 = vpop.permute.xlu0 %624
      %626 = vrot.lane.b32.xlu0 %v332, 16
      %v627 = vpop.permute.xlu0 %626
      %628 = vrot.lane.b32.xlu0 %v334, 16
      %v629 = vpop.permute.xlu0 %628
      %630 = vrot.lane.b32.xlu0 %v336, 16
      %v631 = vpop.permute.xlu0 %630
      %v650 = vrot.slane %v297, 1
      %v651 = vrot.slane %v298, 1
      %v652 = vsel %vm442, %v650, %v651
      %653 = vrot.lane.b32.xlu0 %v448, 20
      %v654 = vpop.permute.xlu0 %653
      %655 = vrot.lane.b32.xlu0 %v451, 20
      %v656 = vpop.permute.xlu0 %655
      %657 = vrot.lane.b32.xlu0 %v454, 20
      %v658 = vpop.permute.xlu0 %657
      %659 = vrot.lane.b32.xlu0 %v457, 20
      %v660 = vpop.permute.xlu0 %659
      %661 = vrot.lane.b32.xlu0 %v460, 20
      %v662 = vpop.permute.xlu0 %661
      %663 = vrot.lane.b32.xlu0 %v463, 20
      %v664 = vpop.permute.xlu0 %663
      %665 = vrot.lane.b32.xlu0 %v466, 20
      %v666 = vpop.permute.xlu0 %665
      %667 = vrot.lane.b32.xlu0 %v469, 20
      %v668 = vpop.permute.xlu0 %667
      %669 = vrot.lane.b32.xlu0 %v472, 20
      %v670 = vpop.permute.xlu0 %669
      %671 = vrot.lane.b32.xlu0 %v475, 20
      %v672 = vpop.permute.xlu0 %671
      %673 = vrot.lane.b32.xlu0 %v478, 20
      %v674 = vpop.permute.xlu0 %673
      %675 = vrot.lane.b32.xlu0 %v481, 20
      %v676 = vpop.permute.xlu0 %675
      %677 = vrot.lane.b32.xlu0 %v484, 20
      %v678 = vpop.permute.xlu0 %677
      %679 = vrot.lane.b32.xlu0 %v487, 20
      %v680 = vpop.permute.xlu0 %679
      %681 = vrot.lane.b32.xlu0 %v490, 20
      %v682 = vpop.permute.xlu0 %681
      %683 = vrot.lane.b32.xlu0 %v493, 20
      %v684 = vpop.permute.xlu0 %683
      %685 = vrot.lane.b32.xlu0 %v652, 20
      %v686 = vpop.permute.xlu0 %685
      %705 = vrot.lane.b32.xlu0 %v267, 24
      %v706 = vpop.permute.xlu0 %705
      %707 = vrot.lane.b32.xlu0 %v269, 24
      %v708 = vpop.permute.xlu0 %707
      %709 = vrot.lane.b32.xlu0 %v271, 24
      %v710 = vpop.permute.xlu0 %709
      %711 = vrot.lane.b32.xlu0 %v273, 24
      %v712 = vpop.permute.xlu0 %711
      %713 = vrot.lane.b32.xlu0 %v275, 24
      %v714 = vpop.permute.xlu0 %713
      %715 = vrot.lane.b32.xlu0 %v277, 24
      %v716 = vpop.permute.xlu0 %715
      %717 = vrot.lane.b32.xlu0 %v279, 24
      %v718 = vpop.permute.xlu0 %717
      %719 = vrot.lane.b32.xlu0 %v281, 24
      %v720 = vpop.permute.xlu0 %719
      %721 = vrot.lane.b32.xlu0 %v283, 24
      %v722 = vpop.permute.xlu0 %721
      %723 = vrot.lane.b32.xlu0 %v285, 24
      %v724 = vpop.permute.xlu0 %723
      %725 = vrot.lane.b32.xlu0 %v287, 24
      %v726 = vpop.permute.xlu0 %725
      %727 = vrot.lane.b32.xlu0 %v289, 24
      %v728 = vpop.permute.xlu0 %727
      %729 = vrot.lane.b32.xlu0 %v291, 24
      %v730 = vpop.permute.xlu0 %729
      %731 = vrot.lane.b32.xlu0 %v293, 24
      %v732 = vpop.permute.xlu0 %731
      %733 = vrot.lane.b32.xlu0 %v295, 24
      %v734 = vpop.permute.xlu0 %733
      %735 = vrot.lane.b32.xlu0 %v297, 24
      %v736 = vpop.permute.xlu0 %735
      %737 = vrot.lane.b32.xlu0 %v299, 24
      %v738 = vpop.permute.xlu0 %737
      %757 = vrot.lane.b32.xlu0 %v306, 28
      %v758 = vpop.permute.xlu0 %757
      %759 = vrot.lane.b32.xlu0 %v308, 28
      %v760 = vpop.permute.xlu0 %759
      %761 = vrot.lane.b32.xlu0 %v310, 28
      %v762 = vpop.permute.xlu0 %761
      %763 = vrot.lane.b32.xlu0 %v312, 28
      %v764 = vpop.permute.xlu0 %763
      %765 = vrot.lane.b32.xlu0 %v314, 28
      %v766 = vpop.permute.xlu0 %765
      %767 = vrot.lane.b32.xlu0 %v316, 28
      %v768 = vpop.permute.xlu0 %767
      %769 = vrot.lane.b32.xlu0 %v318, 28
      %v770 = vpop.permute.xlu0 %769
      %771 = vrot.lane.b32.xlu0 %v320, 28
      %v772 = vpop.permute.xlu0 %771
      %773 = vrot.lane.b32.xlu0 %v322, 28
      %v774 = vpop.permute.xlu0 %773
      %775 = vrot.lane.b32.xlu0 %v324, 28
      %v776 = vpop.permute.xlu0 %775
      %777 = vrot.lane.b32.xlu0 %v326, 28
      %v778 = vpop.permute.xlu0 %777
      %779 = vrot.lane.b32.xlu0 %v328, 28
      %v780 = vpop.permute.xlu0 %779
      %781 = vrot.lane.b32.xlu0 %v330, 28
      %v782 = vpop.permute.xlu0 %781
      %783 = vrot.lane.b32.xlu0 %v332, 28
      %v784 = vpop.permute.xlu0 %783
      %785 = vrot.lane.b32.xlu0 %v334, 28
      %v786 = vpop.permute.xlu0 %785
      %787 = vrot.lane.b32.xlu0 %v336, 28
      %v788 = vpop.permute.xlu0 %787
      %789 = vrot.lane.b32.xlu0 %v338, 28
      %v790 = vpop.permute.xlu0 %789
      %v809 = vrot.slane %v299, 1
      %v810 = vrot.slane %v300, 1
      %v811 = vsel %vm442, %v809, %v810
      %812 = vrot.lane.b32.xlu0 %v451, 32
      %v813 = vpop.permute.xlu0 %812
      %814 = vrot.lane.b32.xlu0 %v454, 32
      %v815 = vpop.permute.xlu0 %814
      %816 = vrot.lane.b32.xlu0 %v457, 32
      %v817 = vpop.permute.xlu0 %816
      %818 = vrot.lane.b32.xlu0 %v460, 32
      %v819 = vpop.permute.xlu0 %818
      %820 = vrot.lane.b32.xlu0 %v463, 32
      %v821 = vpop.permute.xlu0 %820
      %822 = vrot.lane.b32.xlu0 %v466, 32
      %v823 = vpop.permute.xlu0 %822
      %824 = vrot.lane.b32.xlu0 %v469, 32
      %v825 = vpop.permute.xlu0 %824
      %826 = vrot.lane.b32.xlu0 %v472, 32
      %v827 = vpop.permute.xlu0 %826
      %828 = vrot.lane.b32.xlu0 %v475, 32
      %v829 = vpop.permute.xlu0 %828
      %830 = vrot.lane.b32.xlu0 %v478, 32
      %v831 = vpop.permute.xlu0 %830
      %832 = vrot.lane.b32.xlu0 %v481, 32
      %v833 = vpop.permute.xlu0 %832
      %834 = vrot.lane.b32.xlu0 %v484, 32
      %v835 = vpop.permute.xlu0 %834
      %836 = vrot.lane.b32.xlu0 %v487, 32
      %v837 = vpop.permute.xlu0 %836
      %838 = vrot.lane.b32.xlu0 %v490, 32
      %v839 = vpop.permute.xlu0 %838
      %840 = vrot.lane.b32.xlu0 %v493, 32
      %v841 = vpop.permute.xlu0 %840
      %842 = vrot.lane.b32.xlu0 %v652, 32
      %v843 = vpop.permute.xlu0 %842
      %844 = vrot.lane.b32.xlu0 %v811, 32
      %v845 = vpop.permute.xlu0 %844
      %vm863 = vcmask 31744
      %v864 = vsel %vm863, %v263, %v358
      %v865 = vsel %vm863, %v265, %v360
      %v866 = vsel %vm863, %v267, %v362
      %v867 = vsel %vm863, %v269, %v364
      %v868 = vsel %vm863, %v271, %v366
      %v869 = vsel %vm863, %v273, %v368
      %v870 = vsel %vm863, %v275, %v370
      %v871 = vsel %vm863, %v277, %v372
      %v872 = vsel %vm863, %v279, %v374
      %v873 = vsel %vm863, %v281, %v376
      %v874 = vsel %vm863, %v283, %v378
      %v875 = vsel %vm863, %v285, %v380
      %v876 = vsel %vm863, %v287, %v382
      %v877 = vsel %vm863, %v289, %v384
      %v878 = vsel %vm863, %v291, %v386
      %v879 = vsel %vm863, %v293, %v388
      %v880 = vsel %vm863, %v295, %v390
      %vm881 = vcmask 64512
      %v882 = vsel %vm881, %v864, %v495
      %v883 = vsel %vm881, %v865, %v497
      %v884 = vsel %vm881, %v866, %v499
      %v885 = vsel %vm881, %v867, %v501
      %v886 = vsel %vm881, %v868, %v503
      %v887 = vsel %vm881, %v869, %v505
      %v888 = vsel %vm881, %v870, %v507
      %v889 = vsel %vm881, %v871, %v509
      %v890 = vsel %vm881, %v872, %v511
      %v891 = vsel %vm881, %v873, %v513
      %v892 = vsel %vm881, %v874, %v515
      %v893 = vsel %vm881, %v875, %v517
      %v894 = vsel %vm881, %v876, %v519
      %v895 = vsel %vm881, %v877, %v521
      %v896 = vsel %vm881, %v878, %v523
      %v897 = vsel %vm881, %v879, %v525
      %v898 = vsel %vm881, %v880, %v527
      %vm899 = vcmask 97280
      %v900 = vsel %vm899, %v882, %v547
      %v901 = vsel %vm899, %v883, %v549
      %v902 = vsel %vm899, %v884, %v551
      %v903 = vsel %vm899, %v885, %v553
      %v904 = vsel %vm899, %v886, %v555
      %v905 = vsel %vm899, %v887, %v557
      %v906 = vsel %vm899, %v888, %v559
      %v907 = vsel %vm899, %v889, %v561
      %v908 = vsel %vm899, %v890, %v563
      %v909 = vsel %vm899, %v891, %v565
      %v910 = vsel %vm899, %v892, %v567
      %v911 = vsel %vm899, %v893, %v569
      %v912 = vsel %vm899, %v894, %v571
      %v913 = vsel %vm899, %v895, %v573
      %v914 = vsel %vm899, %v896, %v575
      %v915 = vsel %vm899, %v897, %v577
      %v916 = vsel %vm899, %v898, %v579
      %vm917 = vcmask 130048
      %v918 = vsel %vm917, %v900, %v599
      %v919 = vsel %vm917, %v901, %v601
      %v920 = vsel %vm917, %v902, %v603
      %v921 = vsel %vm917, %v903, %v605
      %v922 = vsel %vm917, %v904, %v607
      %v923 = vsel %vm917, %v905, %v609
      %v924 = vsel %vm917, %v906, %v611
      %v925 = vsel %vm917, %v907, %v613
      %v926 = vsel %vm917, %v908, %v615
      %v927 = vsel %vm917, %v909, %v617
      %v928 = vsel %vm917, %v910, %v619
      %v929 = vsel %vm917, %v911, %v621
      %v930 = vsel %vm917, %v912, %v623
      %v931 = vsel %vm917, %v913, %v625
      %v932 = vsel %vm917, %v914, %v627
      %v933 = vsel %vm917, %v915, %v629
      %v934 = vsel %vm917, %v916, %v631
      %vm935 = vcmask 162816
      %v936 = vsel %vm935, %v918, %v654
      %v937 = vsel %vm935, %v919, %v656
      %v938 = vsel %vm935, %v920, %v658
      %v939 = vsel %vm935, %v921, %v660
      %v940 = vsel %vm935, %v922, %v662
      %v941 = vsel %vm935, %v923, %v664
      %v942 = vsel %vm935, %v924, %v666
      %v943 = vsel %vm935, %v925, %v668
      %v944 = vsel %vm935, %v926, %v670
      %v945 = vsel %vm935, %v927, %v672
      %v946 = vsel %vm935, %v928, %v674
      %v947 = vsel %vm935, %v929, %v676
      %v948 = vsel %vm935, %v930, %v678
      %v949 = vsel %vm935, %v931, %v680
      %v950 = vsel %vm935, %v932, %v682
      %v951 = vsel %vm935, %v933, %v684
      %v952 = vsel %vm935, %v934, %v686
      %vm953 = vcmask 195584
      %v954 = vsel %vm953, %v936, %v706
      %v955 = vsel %vm953, %v937, %v708
      %v956 = vsel %vm953, %v938, %v710
      %v957 = vsel %vm953, %v939, %v712
      %v958 = vsel %vm953, %v940, %v714
      %v959 = vsel %vm953, %v941, %v716
      %v960 = vsel %vm953, %v942, %v718
      %v961 = vsel %vm953, %v943, %v720
      %v962 = vsel %vm953, %v944, %v722
      %v963 = vsel %vm953, %v945, %v724
      %v964 = vsel %vm953, %v946, %v726
      %v965 = vsel %vm953, %v947, %v728
      %v966 = vsel %vm953, %v948, %v730
      %v967 = vsel %vm953, %v949, %v732
      %v968 = vsel %vm953, %v950, %v734
      %v969 = vsel %vm953, %v951, %v736
      %v970 = vsel %vm953, %v952, %v738
      %vm971 = vcmask 228352
      %v972 = vsel %vm971, %v954, %v758
      %v973 = vsel %vm971, %v955, %v760
      %v974 = vsel %vm971, %v956, %v762
      %v975 = vsel %vm971, %v957, %v764
      %v976 = vsel %vm971, %v958, %v766
      %v977 = vsel %vm971, %v959, %v768
      %v978 = vsel %vm971, %v960, %v770
      %v979 = vsel %vm971, %v961, %v772
      %v980 = vsel %vm971, %v962, %v774
      %v981 = vsel %vm971, %v963, %v776
      %v982 = vsel %vm971, %v964, %v778
      %v983 = vsel %vm971, %v965, %v780
      %v984 = vsel %vm971, %v966, %v782
      %v985 = vsel %vm971, %v967, %v784
      %v986 = vsel %vm971, %v968, %v786
      %v987 = vsel %vm971, %v969, %v788
      %v988 = vsel %vm971, %v970, %v790
      %vm989 = vcmask 261120
      %v990 = vsel %vm989, %v972, %v813
      %v991 = vsel %vm989, %v973, %v815
      %v992 = vsel %vm989, %v974, %v817
      %v993 = vsel %vm989, %v975, %v819
      %v994 = vsel %vm989, %v976, %v821
      %v995 = vsel %vm989, %v977, %v823
      %v996 = vsel %vm989, %v978, %v825
      %v997 = vsel %vm989, %v979, %v827
      %v998 = vsel %vm989, %v980, %v829
      %v999 = vsel %vm989, %v981, %v831
      %v1000 = vsel %vm989, %v982, %v833
      %v1001 = vsel %vm989, %v983, %v835
      %v1002 = vsel %vm989, %v984, %v837
      %v1003 = vsel %vm989, %v985, %v839
      %v1004 = vsel %vm989, %v986, %v841
      %v1005 = vsel %vm989, %v987, %v843
      %v1006 = vsel %vm989, %v988, %v845
      %1007 = vrot.lane.b32.xlu0 %v445, 4
      %v1008 = vpop.permute.xlu0 %1007
      %1009 = vrot.lane.b32.xlu0 %v448, 4
      %v1010 = vpop.permute.xlu0 %1009
      %1011 = vrot.lane.b32.xlu0 %v451, 4
      %v1012 = vpop.permute.xlu0 %1011
      %1013 = vrot.lane.b32.xlu0 %v454, 4
      %v1014 = vpop.permute.xlu0 %1013
      %1015 = vrot.lane.b32.xlu0 %v457, 4
      %v1016 = vpop.permute.xlu0 %1015
      %1017 = vrot.lane.b32.xlu0 %v460, 4
      %v1018 = vpop.permute.xlu0 %1017
      %1019 = vrot.lane.b32.xlu0 %v463, 4
      %v1020 = vpop.permute.xlu0 %1019
      %1021 = vrot.lane.b32.xlu0 %v466, 4
      %v1022 = vpop.permute.xlu0 %1021
      %1023 = vrot.lane.b32.xlu0 %v469, 4
      %v1024 = vpop.permute.xlu0 %1023
      %1025 = vrot.lane.b32.xlu0 %v472, 4
      %v1026 = vpop.permute.xlu0 %1025
      %1027 = vrot.lane.b32.xlu0 %v475, 4
      %v1028 = vpop.permute.xlu0 %1027
      %1029 = vrot.lane.b32.xlu0 %v478, 4
      %v1030 = vpop.permute.xlu0 %1029
      %1031 = vrot.lane.b32.xlu0 %v481, 4
      %v1032 = vpop.permute.xlu0 %1031
      %1033 = vrot.lane.b32.xlu0 %v484, 4
      %v1034 = vpop.permute.xlu0 %1033
      %1035 = vrot.lane.b32.xlu0 %v487, 4
      %v1036 = vpop.permute.xlu0 %1035
      %1037 = vrot.lane.b32.xlu0 %v490, 4
      %v1038 = vpop.permute.xlu0 %1037
      %1039 = vrot.lane.b32.xlu0 %v493, 4
      %v1040 = vpop.permute.xlu0 %1039
      %v1075 = vrot.slane %v302, 1
      %v1076 = vrot.slane %v303, 1
      %v1077 = vsel %vm442, %v1075, %v1076
      %v1078 = vrot.slane %v304, 1
      %v1079 = vrot.slane %v305, 1
      %v1080 = vsel %vm442, %v1078, %v1079
      %v1081 = vrot.slane %v306, 1
      %v1082 = vrot.slane %v307, 1
      %v1083 = vsel %vm442, %v1081, %v1082
      %v1084 = vrot.slane %v308, 1
      %v1085 = vrot.slane %v309, 1
      %v1086 = vsel %vm442, %v1084, %v1085
      %v1087 = vrot.slane %v310, 1
      %v1088 = vrot.slane %v311, 1
      %v1089 = vsel %vm442, %v1087, %v1088
      %v1090 = vrot.slane %v312, 1
      %v1091 = vrot.slane %v313, 1
      %v1092 = vsel %vm442, %v1090, %v1091
      %v1093 = vrot.slane %v314, 1
      %v1094 = vrot.slane %v315, 1
      %v1095 = vsel %vm442, %v1093, %v1094
      %v1096 = vrot.slane %v316, 1
      %v1097 = vrot.slane %v317, 1
      %v1098 = vsel %vm442, %v1096, %v1097
      %v1099 = vrot.slane %v318, 1
      %v1100 = vrot.slane %v319, 1
      %v1101 = vsel %vm442, %v1099, %v1100
      %v1102 = vrot.slane %v320, 1
      %v1103 = vrot.slane %v321, 1
      %v1104 = vsel %vm442, %v1102, %v1103
      %v1105 = vrot.slane %v322, 1
      %v1106 = vrot.slane %v323, 1
      %v1107 = vsel %vm442, %v1105, %v1106
      %v1108 = vrot.slane %v324, 1
      %v1109 = vrot.slane %v325, 1
      %v1110 = vsel %vm442, %v1108, %v1109
      %v1111 = vrot.slane %v326, 1
      %v1112 = vrot.slane %v327, 1
      %v1113 = vsel %vm442, %v1111, %v1112
      %v1114 = vrot.slane %v328, 1
      %v1115 = vrot.slane %v329, 1
      %v1116 = vsel %vm442, %v1114, %v1115
      %v1117 = vrot.slane %v330, 1
      %v1118 = vrot.slane %v331, 1
      %v1119 = vsel %vm442, %v1117, %v1118
      %v1120 = vrot.slane %v332, 1
      %v1121 = vrot.slane %v333, 1
      %v1122 = vsel %vm442, %v1120, %v1121
      %v1123 = vrot.slane %v334, 1
      %v1124 = vrot.slane %v335, 1
      %v1125 = vsel %vm442, %v1123, %v1124
      %1126 = vrot.lane.b32.xlu0 %v1077, 8
      %v1127 = vpop.permute.xlu0 %1126
      %1128 = vrot.lane.b32.xlu0 %v1080, 8
      %v1129 = vpop.permute.xlu0 %1128
      %1130 = vrot.lane.b32.xlu0 %v1083, 8
      %v1131 = vpop.permute.xlu0 %1130
      %1132 = vrot.lane.b32.xlu0 %v1086, 8
      %v1133 = vpop.permute.xlu0 %1132
      %1134 = vrot.lane.b32.xlu0 %v1089, 8
      %v1135 = vpop.permute.xlu0 %1134
      %1136 = vrot.lane.b32.xlu0 %v1092, 8
      %v1137 = vpop.permute.xlu0 %1136
      %1138 = vrot.lane.b32.xlu0 %v1095, 8
      %v1139 = vpop.permute.xlu0 %1138
      %1140 = vrot.lane.b32.xlu0 %v1098, 8
      %v1141 = vpop.permute.xlu0 %1140
      %1142 = vrot.lane.b32.xlu0 %v1101, 8
      %v1143 = vpop.permute.xlu0 %1142
      %1144 = vrot.lane.b32.xlu0 %v1104, 8
      %v1145 = vpop.permute.xlu0 %1144
      %1146 = vrot.lane.b32.xlu0 %v1107, 8
      %v1147 = vpop.permute.xlu0 %1146
      %1148 = vrot.lane.b32.xlu0 %v1110, 8
      %v1149 = vpop.permute.xlu0 %1148
      %1150 = vrot.lane.b32.xlu0 %v1113, 8
      %v1151 = vpop.permute.xlu0 %1150
      %1152 = vrot.lane.b32.xlu0 %v1116, 8
      %v1153 = vpop.permute.xlu0 %1152
      %1154 = vrot.lane.b32.xlu0 %v1119, 8
      %v1155 = vpop.permute.xlu0 %1154
      %1156 = vrot.lane.b32.xlu0 %v1122, 8
      %v1157 = vpop.permute.xlu0 %1156
      %1158 = vrot.lane.b32.xlu0 %v1125, 8
      %v1159 = vpop.permute.xlu0 %1158
      %1177 = vrot.lane.b32.xlu0 %v304, 12
      %v1178 = vpop.permute.xlu0 %1177
      %1179 = vrot.lane.b32.xlu0 %v306, 12
      %v1180 = vpop.permute.xlu0 %1179
      %1181 = vrot.lane.b32.xlu0 %v308, 12
      %v1182 = vpop.permute.xlu0 %1181
      %1183 = vrot.lane.b32.xlu0 %v310, 12
      %v1184 = vpop.permute.xlu0 %1183
      %1185 = vrot.lane.b32.xlu0 %v312, 12
      %v1186 = vpop.permute.xlu0 %1185
      %1187 = vrot.lane.b32.xlu0 %v314, 12
      %v1188 = vpop.permute.xlu0 %1187
      %1189 = vrot.lane.b32.xlu0 %v316, 12
      %v1190 = vpop.permute.xlu0 %1189
      %1191 = vrot.lane.b32.xlu0 %v318, 12
      %v1192 = vpop.permute.xlu0 %1191
      %1193 = vrot.lane.b32.xlu0 %v320, 12
      %v1194 = vpop.permute.xlu0 %1193
      %1195 = vrot.lane.b32.xlu0 %v322, 12
      %v1196 = vpop.permute.xlu0 %1195
      %1197 = vrot.lane.b32.xlu0 %v324, 12
      %v1198 = vpop.permute.xlu0 %1197
      %1199 = vrot.lane.b32.xlu0 %v326, 12
      %v1200 = vpop.permute.xlu0 %1199
      %1201 = vrot.lane.b32.xlu0 %v328, 12
      %v1202 = vpop.permute.xlu0 %1201
      %1203 = vrot.lane.b32.xlu0 %v330, 12
      %v1204 = vpop.permute.xlu0 %1203
      %1205 = vrot.lane.b32.xlu0 %v332, 12
      %v1206 = vpop.permute.xlu0 %1205
      %1207 = vrot.lane.b32.xlu0 %v334, 12
      %v1208 = vpop.permute.xlu0 %1207
      %1209 = vrot.lane.b32.xlu0 %v336, 12
      %v1210 = vpop.permute.xlu0 %1209
      %1228 = vrot.lane.b32.xlu0 %v448, 16
      %v1229 = vpop.permute.xlu0 %1228
      %1230 = vrot.lane.b32.xlu0 %v451, 16
      %v1231 = vpop.permute.xlu0 %1230
      %1232 = vrot.lane.b32.xlu0 %v454, 16
      %v1233 = vpop.permute.xlu0 %1232
      %1234 = vrot.lane.b32.xlu0 %v457, 16
      %v1235 = vpop.permute.xlu0 %1234
      %1236 = vrot.lane.b32.xlu0 %v460, 16
      %v1237 = vpop.permute.xlu0 %1236
      %1238 = vrot.lane.b32.xlu0 %v463, 16
      %v1239 = vpop.permute.xlu0 %1238
      %1240 = vrot.lane.b32.xlu0 %v466, 16
      %v1241 = vpop.permute.xlu0 %1240
      %1242 = vrot.lane.b32.xlu0 %v469, 16
      %v1243 = vpop.permute.xlu0 %1242
      %1244 = vrot.lane.b32.xlu0 %v472, 16
      %v1245 = vpop.permute.xlu0 %1244
      %1246 = vrot.lane.b32.xlu0 %v475, 16
      %v1247 = vpop.permute.xlu0 %1246
      %1248 = vrot.lane.b32.xlu0 %v478, 16
      %v1249 = vpop.permute.xlu0 %1248
      %1250 = vrot.lane.b32.xlu0 %v481, 16
      %v1251 = vpop.permute.xlu0 %1250
      %1252 = vrot.lane.b32.xlu0 %v484, 16
      %v1253 = vpop.permute.xlu0 %1252
      %1254 = vrot.lane.b32.xlu0 %v487, 16
      %v1255 = vpop.permute.xlu0 %1254
      %1256 = vrot.lane.b32.xlu0 %v490, 16
      %v1257 = vpop.permute.xlu0 %1256
      %1258 = vrot.lane.b32.xlu0 %v493, 16
      %v1259 = vpop.permute.xlu0 %1258
      %1260 = vrot.lane.b32.xlu0 %v652, 16
      %v1261 = vpop.permute.xlu0 %1260
      %v1280 = vrot.slane %v336, 1
      %v1281 = vrot.slane %v337, 1
      %v1282 = vsel %vm442, %v1280, %v1281
      %1283 = vrot.lane.b32.xlu0 %v1080, 20
      %v1284 = vpop.permute.xlu0 %1283
      %1285 = vrot.lane.b32.xlu0 %v1083, 20
      %v1286 = vpop.permute.xlu0 %1285
      %1287 = vrot.lane.b32.xlu0 %v1086, 20
      %v1288 = vpop.permute.xlu0 %1287
      %1289 = vrot.lane.b32.xlu0 %v1089, 20
      %v1290 = vpop.permute.xlu0 %1289
      %1291 = vrot.lane.b32.xlu0 %v1092, 20
      %v1292 = vpop.permute.xlu0 %1291
      %1293 = vrot.lane.b32.xlu0 %v1095, 20
      %v1294 = vpop.permute.xlu0 %1293
      %1295 = vrot.lane.b32.xlu0 %v1098, 20
      %v1296 = vpop.permute.xlu0 %1295
      %1297 = vrot.lane.b32.xlu0 %v1101, 20
      %v1298 = vpop.permute.xlu0 %1297
      %1299 = vrot.lane.b32.xlu0 %v1104, 20
      %v1300 = vpop.permute.xlu0 %1299
      %1301 = vrot.lane.b32.xlu0 %v1107, 20
      %v1302 = vpop.permute.xlu0 %1301
      %1303 = vrot.lane.b32.xlu0 %v1110, 20
      %v1304 = vpop.permute.xlu0 %1303
      %1305 = vrot.lane.b32.xlu0 %v1113, 20
      %v1306 = vpop.permute.xlu0 %1305
      %1307 = vrot.lane.b32.xlu0 %v1116, 20
      %v1308 = vpop.permute.xlu0 %1307
      %1309 = vrot.lane.b32.xlu0 %v1119, 20
      %v1310 = vpop.permute.xlu0 %1309
      %1311 = vrot.lane.b32.xlu0 %v1122, 20
      %v1312 = vpop.permute.xlu0 %1311
      %1313 = vrot.lane.b32.xlu0 %v1125, 20
      %v1314 = vpop.permute.xlu0 %1313
      %1315 = vrot.lane.b32.xlu0 %v1282, 20
      %v1316 = vpop.permute.xlu0 %1315
      %1334 = vrot.lane.b32.xlu0 %v306, 24
      %v1335 = vpop.permute.xlu0 %1334
      %1336 = vrot.lane.b32.xlu0 %v308, 24
      %v1337 = vpop.permute.xlu0 %1336
      %1338 = vrot.lane.b32.xlu0 %v310, 24
      %v1339 = vpop.permute.xlu0 %1338
      %1340 = vrot.lane.b32.xlu0 %v312, 24
      %v1341 = vpop.permute.xlu0 %1340
      %1342 = vrot.lane.b32.xlu0 %v314, 24
      %v1343 = vpop.permute.xlu0 %1342
      %1344 = vrot.lane.b32.xlu0 %v316, 24
      %v1345 = vpop.permute.xlu0 %1344
      %1346 = vrot.lane.b32.xlu0 %v318, 24
      %v1347 = vpop.permute.xlu0 %1346
      %1348 = vrot.lane.b32.xlu0 %v320, 24
      %v1349 = vpop.permute.xlu0 %1348
      %1350 = vrot.lane.b32.xlu0 %v322, 24
      %v1351 = vpop.permute.xlu0 %1350
      %1352 = vrot.lane.b32.xlu0 %v324, 24
      %v1353 = vpop.permute.xlu0 %1352
      %1354 = vrot.lane.b32.xlu0 %v326, 24
      %v1355 = vpop.permute.xlu0 %1354
      %1356 = vrot.lane.b32.xlu0 %v328, 24
      %v1357 = vpop.permute.xlu0 %1356
      %1358 = vrot.lane.b32.xlu0 %v330, 24
      %v1359 = vpop.permute.xlu0 %1358
      %1360 = vrot.lane.b32.xlu0 %v332, 24
      %v1361 = vpop.permute.xlu0 %1360
      %1362 = vrot.lane.b32.xlu0 %v334, 24
      %v1363 = vpop.permute.xlu0 %1362
      %1364 = vrot.lane.b32.xlu0 %v336, 24
      %v1365 = vpop.permute.xlu0 %1364
      %1366 = vrot.lane.b32.xlu0 %v338, 24
      %v1367 = vpop.permute.xlu0 %1366
      %1385 = vrot.lane.b32.xlu0 %v451, 28
      %v1386 = vpop.permute.xlu0 %1385
      %1387 = vrot.lane.b32.xlu0 %v454, 28
      %v1388 = vpop.permute.xlu0 %1387
      %1389 = vrot.lane.b32.xlu0 %v457, 28
      %v1390 = vpop.permute.xlu0 %1389
      %1391 = vrot.lane.b32.xlu0 %v460, 28
      %v1392 = vpop.permute.xlu0 %1391
      %1393 = vrot.lane.b32.xlu0 %v463, 28
      %v1394 = vpop.permute.xlu0 %1393
      %1395 = vrot.lane.b32.xlu0 %v466, 28
      %v1396 = vpop.permute.xlu0 %1395
      %1397 = vrot.lane.b32.xlu0 %v469, 28
      %v1398 = vpop.permute.xlu0 %1397
      %1399 = vrot.lane.b32.xlu0 %v472, 28
      %v1400 = vpop.permute.xlu0 %1399
      %1401 = vrot.lane.b32.xlu0 %v475, 28
      %v1402 = vpop.permute.xlu0 %1401
      %1403 = vrot.lane.b32.xlu0 %v478, 28
      %v1404 = vpop.permute.xlu0 %1403
      %1405 = vrot.lane.b32.xlu0 %v481, 28
      %v1406 = vpop.permute.xlu0 %1405
      %1407 = vrot.lane.b32.xlu0 %v484, 28
      %v1408 = vpop.permute.xlu0 %1407
      %1409 = vrot.lane.b32.xlu0 %v487, 28
      %v1410 = vpop.permute.xlu0 %1409
      %1411 = vrot.lane.b32.xlu0 %v490, 28
      %v1412 = vpop.permute.xlu0 %1411
      %1413 = vrot.lane.b32.xlu0 %v493, 28
      %v1414 = vpop.permute.xlu0 %1413
      %1415 = vrot.lane.b32.xlu0 %v652, 28
      %v1416 = vpop.permute.xlu0 %1415
      %1417 = vrot.lane.b32.xlu0 %v811, 28
      %v1418 = vpop.permute.xlu0 %1417
      %v1437 = vrot.slane %v338, 1
      %v1438 = vrot.slane %v339, 1
      %v1439 = vsel %vm442, %v1437, %v1438
      %1440 = vrot.lane.b32.xlu0 %v1083, 32
      %v1441 = vpop.permute.xlu0 %1440
      %1442 = vrot.lane.b32.xlu0 %v1086, 32
      %v1443 = vpop.permute.xlu0 %1442
      %1444 = vrot.lane.b32.xlu0 %v1089, 32
      %v1445 = vpop.permute.xlu0 %1444
      %1446 = vrot.lane.b32.xlu0 %v1092, 32
      %v1447 = vpop.permute.xlu0 %1446
      %1448 = vrot.lane.b32.xlu0 %v1095, 32
      %v1449 = vpop.permute.xlu0 %1448
      %1450 = vrot.lane.b32.xlu0 %v1098, 32
      %v1451 = vpop.permute.xlu0 %1450
      %1452 = vrot.lane.b32.xlu0 %v1101, 32
      %v1453 = vpop.permute.xlu0 %1452
      %1454 = vrot.lane.b32.xlu0 %v1104, 32
      %v1455 = vpop.permute.xlu0 %1454
      %1456 = vrot.lane.b32.xlu0 %v1107, 32
      %v1457 = vpop.permute.xlu0 %1456
      %1458 = vrot.lane.b32.xlu0 %v1110, 32
      %v1459 = vpop.permute.xlu0 %1458
      %1460 = vrot.lane.b32.xlu0 %v1113, 32
      %v1461 = vpop.permute.xlu0 %1460
      %1462 = vrot.lane.b32.xlu0 %v1116, 32
      %v1463 = vpop.permute.xlu0 %1462
      %1464 = vrot.lane.b32.xlu0 %v1119, 32
      %v1465 = vpop.permute.xlu0 %1464
      %1466 = vrot.lane.b32.xlu0 %v1122, 32
      %v1467 = vpop.permute.xlu0 %1466
      %1468 = vrot.lane.b32.xlu0 %v1125, 32
      %v1469 = vpop.permute.xlu0 %1468
      %1470 = vrot.lane.b32.xlu0 %v1282, 32
      %v1471 = vpop.permute.xlu0 %1470
      %1472 = vrot.lane.b32.xlu0 %v1439, 32
      %v1473 = vpop.permute.xlu0 %1472
      %v1491 = vsel %vm863, %v302, %v1008
      %v1492 = vsel %vm863, %v304, %v1010
      %v1493 = vsel %vm863, %v306, %v1012
      %v1494 = vsel %vm863, %v308, %v1014
      %v1495 = vsel %vm863, %v310, %v1016
      %v1496 = vsel %vm863, %v312, %v1018
      %v1497 = vsel %vm863, %v314, %v1020
      %v1498 = vsel %vm863, %v316, %v1022
      %v1499 = vsel %vm863, %v318, %v1024
      %v1500 = vsel %vm863, %v320, %v1026
      %v1501 = vsel %vm863, %v322, %v1028
      %v1502 = vsel %vm863, %v324, %v1030
      %v1503 = vsel %vm863, %v326, %v1032
      %v1504 = vsel %vm863, %v328, %v1034
      %v1505 = vsel %vm863, %v330, %v1036
      %v1506 = vsel %vm863, %v332, %v1038
      %v1507 = vsel %vm863, %v334, %v1040
      %v1508 = vsel %vm881, %v1491, %v1127
      %v1509 = vsel %vm881, %v1492, %v1129
      %v1510 = vsel %vm881, %v1493, %v1131
      %v1511 = vsel %vm881, %v1494, %v1133
      %v1512 = vsel %vm881, %v1495, %v1135
      %v1513 = vsel %vm881, %v1496, %v1137
      %v1514 = vsel %vm881, %v1497, %v1139
      %v1515 = vsel %vm881, %v1498, %v1141
      %v1516 = vsel %vm881, %v1499, %v1143
      %v1517 = vsel %vm881, %v1500, %v1145
      %v1518 = vsel %vm881, %v1501, %v1147
      %v1519 = vsel %vm881, %v1502, %v1149
      %v1520 = vsel %vm881, %v1503, %v1151
      %v1521 = vsel %vm881, %v1504, %v1153
      %v1522 = vsel %vm881, %v1505, %v1155
      %v1523 = vsel %vm881, %v1506, %v1157
      %v1524 = vsel %vm881, %v1507, %v1159
      %v1525 = vsel %vm899, %v1508, %v1178
      %v1526 = vsel %vm899, %v1509, %v1180
      %v1527 = vsel %vm899, %v1510, %v1182
      %v1528 = vsel %vm899, %v1511, %v1184
      %v1529 = vsel %vm899, %v1512, %v1186
      %v1530 = vsel %vm899, %v1513, %v1188
      %v1531 = vsel %vm899, %v1514, %v1190
      %v1532 = vsel %vm899, %v1515, %v1192
      %v1533 = vsel %vm899, %v1516, %v1194
      %v1534 = vsel %vm899, %v1517, %v1196
      %v1535 = vsel %vm899, %v1518, %v1198
      %v1536 = vsel %vm899, %v1519, %v1200
      %v1537 = vsel %vm899, %v1520, %v1202
      %v1538 = vsel %vm899, %v1521, %v1204
      %v1539 = vsel %vm899, %v1522, %v1206
      %v1540 = vsel %vm899, %v1523, %v1208
      %v1541 = vsel %vm899, %v1524, %v1210
      %v1542 = vsel %vm917, %v1525, %v1229
      %v1543 = vsel %vm917, %v1526, %v1231
      %v1544 = vsel %vm917, %v1527, %v1233
      %v1545 = vsel %vm917, %v1528, %v1235
      %v1546 = vsel %vm917, %v1529, %v1237
      %v1547 = vsel %vm917, %v1530, %v1239
      %v1548 = vsel %vm917, %v1531, %v1241
      %v1549 = vsel %vm917, %v1532, %v1243
      %v1550 = vsel %vm917, %v1533, %v1245
      %v1551 = vsel %vm917, %v1534, %v1247
      %v1552 = vsel %vm917, %v1535, %v1249
      %v1553 = vsel %vm917, %v1536, %v1251
      %v1554 = vsel %vm917, %v1537, %v1253
      %v1555 = vsel %vm917, %v1538, %v1255
      %v1556 = vsel %vm917, %v1539, %v1257
      %v1557 = vsel %vm917, %v1540, %v1259
      %v1558 = vsel %vm917, %v1541, %v1261
      %v1559 = vsel %vm935, %v1542, %v1284
      %v1560 = vsel %vm935, %v1543, %v1286
      %v1561 = vsel %vm935, %v1544, %v1288
      %v1562 = vsel %vm935, %v1545, %v1290
      %v1563 = vsel %vm935, %v1546, %v1292
      %v1564 = vsel %vm935, %v1547, %v1294
      %v1565 = vsel %vm935, %v1548, %v1296
      %v1566 = vsel %vm935, %v1549, %v1298
      %v1567 = vsel %vm935, %v1550, %v1300
      %v1568 = vsel %vm935, %v1551, %v1302
      %v1569 = vsel %vm935, %v1552, %v1304
      %v1570 = vsel %vm935, %v1553, %v1306
      %v1571 = vsel %vm935, %v1554, %v1308
      %v1572 = vsel %vm935, %v1555, %v1310
      %v1573 = vsel %vm935, %v1556, %v1312
      %v1574 = vsel %vm935, %v1557, %v1314
      %v1575 = vsel %vm935, %v1558, %v1316
      %v1576 = vsel %vm953, %v1559, %v1335
      %v1577 = vsel %vm953, %v1560, %v1337
      %v1578 = vsel %vm953, %v1561, %v1339
      %v1579 = vsel %vm953, %v1562, %v1341
      %v1580 = vsel %vm953, %v1563, %v1343
      %v1581 = vsel %vm953, %v1564, %v1345
      %v1582 = vsel %vm953, %v1565, %v1347
      %v1583 = vsel %vm953, %v1566, %v1349
      %v1584 = vsel %vm953, %v1567, %v1351
      %v1585 = vsel %vm953, %v1568, %v1353
      %v1586 = vsel %vm953, %v1569, %v1355
      %v1587 = vsel %vm953, %v1570, %v1357
      %v1588 = vsel %vm953, %v1571, %v1359
      %v1589 = vsel %vm953, %v1572, %v1361
      %v1590 = vsel %vm953, %v1573, %v1363
      %v1591 = vsel %vm953, %v1574, %v1365
      %v1592 = vsel %vm953, %v1575, %v1367
      %v1593 = vsel %vm971, %v1576, %v1386
      %v1594 = vsel %vm971, %v1577, %v1388
      %v1595 = vsel %vm971, %v1578, %v1390
      %v1596 = vsel %vm971, %v1579, %v1392
      %v1597 = vsel %vm971, %v1580, %v1394
      %v1598 = vsel %vm971, %v1581, %v1396
      %v1599 = vsel %vm971, %v1582, %v1398
      %v1600 = vsel %vm971, %v1583, %v1400
      %v1601 = vsel %vm971, %v1584, %v1402
      %v1602 = vsel %vm971, %v1585, %v1404
      %v1603 = vsel %vm971, %v1586, %v1406
      %v1604 = vsel %vm971, %v1587, %v1408
      %v1605 = vsel %vm971, %v1588, %v1410
      %v1606 = vsel %vm971, %v1589, %v1412
      %v1607 = vsel %vm971, %v1590, %v1414
      %v1608 = vsel %vm971, %v1591, %v1416
      %v1609 = vsel %vm971, %v1592, %v1418
      %v1610 = vsel %vm989, %v1593, %v1441
      %v1611 = vsel %vm989, %v1594, %v1443
      %v1612 = vsel %vm989, %v1595, %v1445
      %v1613 = vsel %vm989, %v1596, %v1447
      %v1614 = vsel %vm989, %v1597, %v1449
      %v1615 = vsel %vm989, %v1598, %v1451
      %v1616 = vsel %vm989, %v1599, %v1453
      %v1617 = vsel %vm989, %v1600, %v1455
      %v1618 = vsel %vm989, %v1601, %v1457
      %v1619 = vsel %vm989, %v1602, %v1459
      %v1620 = vsel %vm989, %v1603, %v1461
      %v1621 = vsel %vm989, %v1604, %v1463
      %v1622 = vsel %vm989, %v1605, %v1465
      %v1623 = vsel %vm989, %v1606, %v1467
      %v1624 = vsel %vm989, %v1607, %v1469
      %v1625 = vsel %vm989, %v1608, %v1471
      %v1626 = vsel %vm989, %v1609, %v1473
      %v1627 = vld [vmem:[%s1] sm:$0xff]
      %v1628 = vld [vmem:[%s1 + $0x8] sm:$0xff]
      %v1629 = vld [vmem:[%s1 + $0x10] sm:$0xff]
      %v1630 = vld [vmem:[%s1 + $0x18] sm:$0xff]
      %v1631 = vld [vmem:[%s1 + $0x20] sm:$0xf]
      %vm1632 = vcmask 293888
      %v1634 = vsel %vm1632, %v990, 0
      %v1637 = vsel %vm1632, %v991, 0
      %v1640 = vsel %vm1632, %v992, 0
      %v1643 = vsel %vm1632, %v993, 0
      %v1646 = vsel %vm1632, %v994, 0
      %v1649 = vsel %vm1632, %v995, 0
      %v1652 = vsel %vm1632, %v996, 0
      %v1655 = vsel %vm1632, %v997, 0
      %v1658 = vsel %vm1632, %v998, 0
      %v1661 = vsel %vm1632, %v999, 0
      %v1664 = vsel %vm1632, %v1000, 0
      %v1667 = vsel %vm1632, %v1001, 0
      %v1670 = vsel %vm1632, %v1002, 0
      %v1673 = vsel %vm1632, %v1003, 0
      %v1676 = vsel %vm1632, %v1004, 0
      %v1679 = vsel %vm1632, %v1005, 0
      %v1682 = vsel %vm1632, %v1006, 0
      %vm1684 = vcmask 1043456
      %v1686 = vsel %vm1684, %v1631, 0
      %1688 = vmatprep.subr.mxu0 0.0
      %1689 = vmatpush1.msra.mxu0 0.0
      %1690 = vmatprep.subr.mxu0 0.0
      %1691 = vmatpush1.msra.mxu0 0.0
      %1692 = vmatprep.subr.mxu0 0.0
      %1693 = vmatpush1.msra.mxu0 0.0
      %1694 = vmatprep.subr.mxu0 0.0
      %1695 = vmatpush1.msra.mxu0 0.0
      %1696 = vmatprep.subr.mxu0 0.0
      %1697 = vmatpush1.msra.mxu0 0.0
      %1698 = vmatprep.subr.mxu0 0.0
      %1699 = vmatpush1.msra.mxu0 0.0
      %1700 = vmatprep.subr.mxu0 0.0
      %1701 = vmatpush1.msra.mxu0 0.0
      %1702 = vmatprep.subr.mxu0 0.0
      %1703 = vmatpush1.msra.mxu0 0.0
      %1704 = vmatprep.subr.mxu0 0.0
      %1705 = vmatpush1.msra.mxu0 0.0
      %1706 = vmatprep.subr.mxu0 0.0
      %1707 = vmatpush1.msra.mxu0 0.0
      %1708 = vmatprep.subr.mxu0 0.0
      %1709 = vmatpush1.msra.mxu0 0.0
      %1710 = vmatprep.subr.mxu0 0.0
      %1711 = vmatpush1.msra.mxu0 %v1686
      %1712 = vmatprep.subr.mxu0 0.0
      %1713 = vmatpush1.msra.mxu0 %v1630
      %1714 = vmatprep.subr.mxu0 0.0
      %1715 = vmatpush1.msra.mxu0 %v1629
      %1716 = vmatprep.subr.mxu0 0.0
      %1717 = vmatpush1.msra.mxu0 %v1628
      %1718 = vmatprep.subr.mxu0 0.0
      %1719 = vmatpush1.msra.mxu0 %v1627
      %1720 = vmatprep.subr.mxu0 0.0
      %1721 = vmatpush2.msra.mxu0 0.0
      %1722 = vmatprep.subr.mxu0 0.0
      %1723 = vmatpush2.msra.mxu0 0.0
      %1724 = vmatprep.subr.mxu0 0.0
      %1725 = vmatpush2.msra.mxu0 0.0
      %1726 = vmatprep.subr.mxu0 0.0
      %1727 = vmatpush2.msra.mxu0 0.0
      %1728 = vmatprep.subr.mxu0 0.0
      %1729 = vmatpush2.msra.mxu0 0.0
      %1730 = vmatprep.subr.mxu0 0.0
      %1731 = vmatpush2.msra.mxu0 0.0
      %1732 = vmatprep.subr.mxu0 0.0
      %1733 = vmatpush2.msra.mxu0 0.0
      %1734 = vmatprep.subr.mxu0 0.0
      %1735 = vmatpush2.msra.mxu0 0.0
      %1736 = vmatprep.subr.mxu0 0.0
      %1737 = vmatpush2.msra.mxu0 0.0
      %1738 = vmatprep.subr.mxu0 0.0
      %1739 = vmatpush2.msra.mxu0 0.0
      %1740 = vmatprep.subr.mxu0 0.0
      %1741 = vmatpush2.msra.mxu0 0.0
      %1742 = vmatprep.subr.mxu0 0.0
      %1743 = vmatpush2.msra.mxu0 0.0
      %1744 = vmatprep.subr.mxu0 0.0
      %1745 = vmatpush2.msra.mxu0 0.0
      %1746 = vmatprep.subr.mxu0 0.0
      %1747 = vmatpush2.msra.mxu0 0.0
      %1748 = vmatprep.subr.mxu0 0.0
      %1749 = vmatpush2.msra.mxu0 0.0
      %1750 = vmatprep.subr.mxu0 0.0
      %1751 = vmatpush2.msra.mxu0 0.0
      %1752 = vmatprep.mubr.f32.mxu0 0.0
      %1753 = vmatmul.mubr.f32.gmra.mxu0 %v1634
      %v1754 = vpop.f32.mrf.mxu0
      %v1755 = vadd.f32 0.0, %v1754
      %v1756 = vpop.f32.mrf.mxu0
      %1757 = vmatprep.mubr.f32.mxu0 0.0
      %1758 = vmatmul.mubr.f32.gmra.mxu0 %v1637
      %v1759 = vpop.f32.mrf.mxu0
      %v1760 = vadd.f32 0.0, %v1759
      %v1761 = vpop.f32.mrf.mxu0
      %1762 = vmatprep.mubr.f32.mxu0 0.0
      %1763 = vmatmul.mubr.f32.gmra.mxu0 %v1640
      %v1764 = vpop.f32.mrf.mxu0
      %v1765 = vadd.f32 0.0, %v1764
      %v1766 = vpop.f32.mrf.mxu0
      %1767 = vmatprep.mubr.f32.mxu0 0.0
      %1768 = vmatmul.mubr.f32.gmra.mxu0 %v1643
      %v1769 = vpop.f32.mrf.mxu0
      %v1770 = vadd.f32 0.0, %v1769
      %v1771 = vpop.f32.mrf.mxu0
      %1772 = vmatprep.mubr.f32.mxu0 0.0
      %1773 = vmatmul.mubr.f32.gmra.mxu0 %v1646
      %v1774 = vpop.f32.mrf.mxu0
      %v1775 = vadd.f32 0.0, %v1774
      %v1776 = vpop.f32.mrf.mxu0
      %1777 = vmatprep.mubr.f32.mxu0 0.0
      %1778 = vmatmul.mubr.f32.gmra.mxu0 %v1649
      %v1779 = vpop.f32.mrf.mxu0
      %v1780 = vadd.f32 0.0, %v1779
      %v1781 = vpop.f32.mrf.mxu0
      %1782 = vmatprep.mubr.f32.mxu0 0.0
      %1783 = vmatmul.mubr.f32.gmra.mxu0 %v1652
      %v1784 = vpop.f32.mrf.mxu0
      %v1785 = vadd.f32 0.0, %v1784
      %v1786 = vpop.f32.mrf.mxu0
      %1787 = vmatprep.mubr.f32.mxu0 0.0
      %1788 = vmatmul.mubr.f32.gmra.mxu0 %v1655
      %v1789 = vpop.f32.mrf.mxu0
      %v1790 = vadd.f32 0.0, %v1789
      %v1791 = vpop.f32.mrf.mxu0
      %1792 = vmatprep.mubr.f32.mxu0 0.0
      %1793 = vmatmul.mubr.f32.gmra.mxu0 %v1658
      %v1794 = vpop.f32.mrf.mxu0
      %v1795 = vadd.f32 0.0, %v1794
      %v1796 = vpop.f32.mrf.mxu0
      %1797 = vmatprep.mubr.f32.mxu0 0.0
      %1798 = vmatmul.mubr.f32.gmra.mxu0 %v1661
      %v1799 = vpop.f32.mrf.mxu0
      %v1800 = vadd.f32 0.0, %v1799
      %v1801 = vpop.f32.mrf.mxu0
      %1802 = vmatprep.mubr.f32.mxu0 0.0
      %1803 = vmatmul.mubr.f32.gmra.mxu0 %v1664
      %v1804 = vpop.f32.mrf.mxu0
      %v1805 = vadd.f32 0.0, %v1804
      %v1806 = vpop.f32.mrf.mxu0
      %1807 = vmatprep.mubr.f32.mxu0 0.0
      %1808 = vmatmul.mubr.f32.gmra.mxu0 %v1667
      %v1809 = vpop.f32.mrf.mxu0
      %v1810 = vadd.f32 0.0, %v1809
      %v1811 = vpop.f32.mrf.mxu0
      %1812 = vmatprep.mubr.f32.mxu0 0.0
      %1813 = vmatmul.mubr.f32.gmra.mxu0 %v1670
      %v1814 = vpop.f32.mrf.mxu0
      %v1815 = vadd.f32 0.0, %v1814
      %v1816 = vpop.f32.mrf.mxu0
      %1817 = vmatprep.mubr.f32.mxu0 0.0
      %1818 = vmatmul.mubr.f32.gmra.mxu0 %v1673
      %v1819 = vpop.f32.mrf.mxu0
      %v1820 = vadd.f32 0.0, %v1819
      %v1821 = vpop.f32.mrf.mxu0
      %1822 = vmatprep.mubr.f32.mxu0 0.0
      %1823 = vmatmul.mubr.f32.gmra.mxu0 %v1676
      %v1824 = vpop.f32.mrf.mxu0
      %v1825 = vadd.f32 0.0, %v1824
      %v1826 = vpop.f32.mrf.mxu0
      %1827 = vmatprep.mubr.f32.mxu0 0.0
      %1828 = vmatmul.mubr.f32.gmra.mxu0 %v1679
      %v1829 = vpop.f32.mrf.mxu0
      %v1830 = vadd.f32 0.0, %v1829
      %v1831 = vpop.f32.mrf.mxu0
      %1832 = vmatprep.mubr.f32.mxu0 0.0
      %1833 = vmatmul.mubr.f32.gmra.mxu0 %v1682
      %v1834 = vpop.f32.mrf.mxu0
      %v1835 = vadd.f32 0.0, %v1834
      %v1836 = vpop.f32.mrf.mxu0
      %1837 = vdwg.mxu0
      %v1839 = vsel %vm1632, %v1610, 0
      %v1842 = vsel %vm1632, %v1611, 0
      %v1845 = vsel %vm1632, %v1612, 0
      %v1848 = vsel %vm1632, %v1613, 0
      %v1851 = vsel %vm1632, %v1614, 0
      %v1854 = vsel %vm1632, %v1615, 0
      %v1857 = vsel %vm1632, %v1616, 0
      %v1860 = vsel %vm1632, %v1617, 0
      %v1863 = vsel %vm1632, %v1618, 0
      %v1866 = vsel %vm1632, %v1619, 0
      %v1869 = vsel %vm1632, %v1620, 0
      %v1872 = vsel %vm1632, %v1621, 0
      %v1875 = vsel %vm1632, %v1622, 0
      %v1878 = vsel %vm1632, %v1623, 0
      %v1881 = vsel %vm1632, %v1624, 0
      %v1884 = vsel %vm1632, %v1625, 0
      %v1887 = vsel %vm1632, %v1626, 0
      %1889 = vmatprep.subr.mxu0 0.0
      %1890 = vmatpush1.msra.mxu0 0.0
      %1891 = vmatprep.subr.mxu0 0.0
      %1892 = vmatpush1.msra.mxu0 0.0
      %1893 = vmatprep.subr.mxu0 0.0
      %1894 = vmatpush1.msra.mxu0 0.0
      %1895 = vmatprep.subr.mxu0 0.0
      %1896 = vmatpush1.msra.mxu0 0.0
      %1897 = vmatprep.subr.mxu0 0.0
      %1898 = vmatpush1.msra.mxu0 0.0
      %1899 = vmatprep.subr.mxu0 0.0
      %1900 = vmatpush1.msra.mxu0 0.0
      %1901 = vmatprep.subr.mxu0 0.0
      %1902 = vmatpush1.msra.mxu0 0.0
      %1903 = vmatprep.subr.mxu0 0.0
      %1904 = vmatpush1.msra.mxu0 0.0
      %1905 = vmatprep.subr.mxu0 0.0
      %1906 = vmatpush1.msra.mxu0 0.0
      %1907 = vmatprep.subr.mxu0 0.0
      %1908 = vmatpush1.msra.mxu0 0.0
      %1909 = vmatprep.subr.mxu0 0.0
      %1910 = vmatpush1.msra.mxu0 0.0
      %1911 = vmatprep.subr.mxu0 0.0
      %1912 = vmatpush1.msra.mxu0 %v1686
      %1913 = vmatprep.subr.mxu0 0.0
      %1914 = vmatpush1.msra.mxu0 %v1630
      %1915 = vmatprep.subr.mxu0 0.0
      %1916 = vmatpush1.msra.mxu0 %v1629
      %1917 = vmatprep.subr.mxu0 0.0
      %1918 = vmatpush1.msra.mxu0 %v1628
      %1919 = vmatprep.subr.mxu0 0.0
      %1920 = vmatpush1.msra.mxu0 %v1627
      %1921 = vmatprep.subr.mxu0 0.0
      %1922 = vmatpush2.msra.mxu0 0.0
      %1923 = vmatprep.subr.mxu0 0.0
      %1924 = vmatpush2.msra.mxu0 0.0
      %1925 = vmatprep.subr.mxu0 0.0
      %1926 = vmatpush2.msra.mxu0 0.0
      %1927 = vmatprep.subr.mxu0 0.0
      %1928 = vmatpush2.msra.mxu0 0.0
      %1929 = vmatprep.subr.mxu0 0.0
      %1930 = vmatpush2.msra.mxu0 0.0
      %1931 = vmatprep.subr.mxu0 0.0
      %1932 = vmatpush2.msra.mxu0 0.0
      %1933 = vmatprep.subr.mxu0 0.0
      %1934 = vmatpush2.msra.mxu0 0.0
      %1935 = vmatprep.subr.mxu0 0.0
      %1936 = vmatpush2.msra.mxu0 0.0
      %1937 = vmatprep.subr.mxu0 0.0
      %1938 = vmatpush2.msra.mxu0 0.0
      %1939 = vmatprep.subr.mxu0 0.0
      %1940 = vmatpush2.msra.mxu0 0.0
      %1941 = vmatprep.subr.mxu0 0.0
      %1942 = vmatpush2.msra.mxu0 0.0
      %1943 = vmatprep.subr.mxu0 0.0
      %1944 = vmatpush2.msra.mxu0 0.0
      %1945 = vmatprep.subr.mxu0 0.0
      %1946 = vmatpush2.msra.mxu0 0.0
      %1947 = vmatprep.subr.mxu0 0.0
      %1948 = vmatpush2.msra.mxu0 0.0
      %1949 = vmatprep.subr.mxu0 0.0
      %1950 = vmatpush2.msra.mxu0 0.0
      %1951 = vmatprep.subr.mxu0 0.0
      %1952 = vmatpush2.msra.mxu0 0.0
      %1953 = vmatprep.mubr.f32.mxu0 0.0
      %1954 = vmatmul.mubr.f32.gmra.mxu0 %v1839
      %v1955 = vpop.f32.mrf.mxu0
      %v1956 = vadd.f32 0.0, %v1955
      %v1957 = vpop.f32.mrf.mxu0
      %1958 = vmatprep.mubr.f32.mxu0 0.0
      %1959 = vmatmul.mubr.f32.gmra.mxu0 %v1842
      %v1960 = vpop.f32.mrf.mxu0
      %v1961 = vadd.f32 0.0, %v1960
      %v1962 = vpop.f32.mrf.mxu0
      %1963 = vmatprep.mubr.f32.mxu0 0.0
      %1964 = vmatmul.mubr.f32.gmra.mxu0 %v1845
      %v1965 = vpop.f32.mrf.mxu0
      %v1966 = vadd.f32 0.0, %v1965
      %v1967 = vpop.f32.mrf.mxu0
      %1968 = vmatprep.mubr.f32.mxu0 0.0
      %1969 = vmatmul.mubr.f32.gmra.mxu0 %v1848
      %v1970 = vpop.f32.mrf.mxu0
      %v1971 = vadd.f32 0.0, %v1970
      %v1972 = vpop.f32.mrf.mxu0
      %1973 = vmatprep.mubr.f32.mxu0 0.0
      %1974 = vmatmul.mubr.f32.gmra.mxu0 %v1851
      %v1975 = vpop.f32.mrf.mxu0
      %v1976 = vadd.f32 0.0, %v1975
      %v1977 = vpop.f32.mrf.mxu0
      %1978 = vmatprep.mubr.f32.mxu0 0.0
      %1979 = vmatmul.mubr.f32.gmra.mxu0 %v1854
      %v1980 = vpop.f32.mrf.mxu0
      %v1981 = vadd.f32 0.0, %v1980
      %v1982 = vpop.f32.mrf.mxu0
      %1983 = vmatprep.mubr.f32.mxu0 0.0
      %1984 = vmatmul.mubr.f32.gmra.mxu0 %v1857
      %v1985 = vpop.f32.mrf.mxu0
      %v1986 = vadd.f32 0.0, %v1985
      %v1987 = vpop.f32.mrf.mxu0
      %1988 = vmatprep.mubr.f32.mxu0 0.0
      %1989 = vmatmul.mubr.f32.gmra.mxu0 %v1860
      %v1990 = vpop.f32.mrf.mxu0
      %v1991 = vadd.f32 0.0, %v1990
      %v1992 = vpop.f32.mrf.mxu0
      %1993 = vmatprep.mubr.f32.mxu0 0.0
      %1994 = vmatmul.mubr.f32.gmra.mxu0 %v1863
      %v1995 = vpop.f32.mrf.mxu0
      %v1996 = vadd.f32 0.0, %v1995
      %v1997 = vpop.f32.mrf.mxu0
      %1998 = vmatprep.mubr.f32.mxu0 0.0
      %1999 = vmatmul.mubr.f32.gmra.mxu0 %v1866
      %v2000 = vpop.f32.mrf.mxu0
      %v2001 = vadd.f32 0.0, %v2000
      %v2002 = vpop.f32.mrf.mxu0
      %2003 = vmatprep.mubr.f32.mxu0 0.0
      %2004 = vmatmul.mubr.f32.gmra.mxu0 %v1869
      %v2005 = vpop.f32.mrf.mxu0
      %v2006 = vadd.f32 0.0, %v2005
      %v2007 = vpop.f32.mrf.mxu0
      %2008 = vmatprep.mubr.f32.mxu0 0.0
      %2009 = vmatmul.mubr.f32.gmra.mxu0 %v1872
      %v2010 = vpop.f32.mrf.mxu0
      %v2011 = vadd.f32 0.0, %v2010
      %v2012 = vpop.f32.mrf.mxu0
      %2013 = vmatprep.mubr.f32.mxu0 0.0
      %2014 = vmatmul.mubr.f32.gmra.mxu0 %v1875
      %v2015 = vpop.f32.mrf.mxu0
      %v2016 = vadd.f32 0.0, %v2015
      %v2017 = vpop.f32.mrf.mxu0
      %2018 = vmatprep.mubr.f32.mxu0 0.0
      %2019 = vmatmul.mubr.f32.gmra.mxu0 %v1878
      %v2020 = vpop.f32.mrf.mxu0
      %v2021 = vadd.f32 0.0, %v2020
      %v2022 = vpop.f32.mrf.mxu0
      %2023 = vmatprep.mubr.f32.mxu0 0.0
      %2024 = vmatmul.mubr.f32.gmra.mxu0 %v1881
      %v2025 = vpop.f32.mrf.mxu0
      %v2026 = vadd.f32 0.0, %v2025
      %v2027 = vpop.f32.mrf.mxu0
      %2028 = vmatprep.mubr.f32.mxu0 0.0
      %2029 = vmatmul.mubr.f32.gmra.mxu0 %v1884
      %v2030 = vpop.f32.mrf.mxu0
      %v2031 = vadd.f32 0.0, %v2030
      %v2032 = vpop.f32.mrf.mxu0
      %2033 = vmatprep.mubr.f32.mxu0 0.0
      %2034 = vmatmul.mubr.f32.gmra.mxu0 %v1887
      %v2035 = vpop.f32.mrf.mxu0
      %v2036 = vadd.f32 0.0, %v2035
      %v2037 = vpop.f32.mrf.mxu0
      %2038 = vdwg.mxu0
      %s2039 = sld [smem:[#allocation2]]
      %vm2040 = vcmp.gt.f32.partialorder %v1755, 0.0
      %vm2041 = vcmp.gt.f32.partialorder %v1760, 0.0
      %vm2042 = vcmp.gt.f32.partialorder %v1765, 0.0
      %vm2043 = vcmp.gt.f32.partialorder %v1770, 0.0
      %vm2044 = vcmp.gt.f32.partialorder %v1775, 0.0
      %vm2045 = vcmp.gt.f32.partialorder %v1780, 0.0
      %vm2046 = vcmp.gt.f32.partialorder %v1785, 0.0
      %vm2047 = vcmp.gt.f32.partialorder %v1790, 0.0
      %vm2048 = vcmp.gt.f32.partialorder %v1795, 0.0
      %vm2049 = vcmp.gt.f32.partialorder %v1800, 0.0
      %vm2050 = vcmp.gt.f32.partialorder %v1805, 0.0
      %vm2051 = vcmp.gt.f32.partialorder %v1810, 0.0
      %vm2052 = vcmp.gt.f32.partialorder %v1815, 0.0
      %vm2053 = vcmp.gt.f32.partialorder %v1820, 0.0
      %vm2054 = vcmp.gt.f32.partialorder %v1825, 0.0
      %vm2055 = vcmp.gt.f32.partialorder %v1830, 0.0
      %vm2056 = vcmp.gt.f32.partialorder %v1835, 0.0
      %v2057 = vstv %s2039
      %v2058 = vmul.f32 %v2057, %v1755
      %v2059 = vmul.f32 %v2057, %v1760
      %v2060 = vmul.f32 %v2057, %v1765
      %v2061 = vmul.f32 %v2057, %v1770
      %v2062 = vmul.f32 %v2057, %v1775
      %v2063 = vmul.f32 %v2057, %v1780
      %v2064 = vmul.f32 %v2057, %v1785
      %v2065 = vmul.f32 %v2057, %v1790
      %v2066 = vmul.f32 %v2057, %v1795
      %v2067 = vmul.f32 %v2057, %v1800
      %v2068 = vmul.f32 %v2057, %v1805
      %v2069 = vmul.f32 %v2057, %v1810
      %v2070 = vmul.f32 %v2057, %v1815
      %v2071 = vmul.f32 %v2057, %v1820
      %v2072 = vmul.f32 %v2057, %v1825
      %v2073 = vmul.f32 %v2057, %v1830
      %v2074 = vmul.f32 %v2057, %v1835
      %v2075 = vsel %vm2040, %v1755, %v2058
      %v2076 = vsel %vm2041, %v1760, %v2059
      %v2077 = vsel %vm2042, %v1765, %v2060
      %v2078 = vsel %vm2043, %v1770, %v2061
      %v2079 = vsel %vm2044, %v1775, %v2062
      %v2080 = vsel %vm2045, %v1780, %v2063
      %v2081 = vsel %vm2046, %v1785, %v2064
      %v2082 = vsel %vm2047, %v1790, %v2065
      %v2083 = vsel %vm2048, %v1795, %v2066
      %v2084 = vsel %vm2049, %v1800, %v2067
      %v2085 = vsel %vm2050, %v1805, %v2068
      %v2086 = vsel %vm2051, %v1810, %v2069
      %v2087 = vsel %vm2052, %v1815, %v2070
      %v2088 = vsel %vm2053, %v1820, %v2071
      %v2089 = vsel %vm2054, %v1825, %v2072
      %v2090 = vsel %vm2055, %v1830, %v2073
      %v2091 = vsel %vm2056, %v1835, %v2074
      %vm2092 = vcmp.gt.f32.partialorder %v1956, 0.0
      %vm2093 = vcmp.gt.f32.partialorder %v1961, 0.0
      %vm2094 = vcmp.gt.f32.partialorder %v1966, 0.0
      %vm2095 = vcmp.gt.f32.partialorder %v1971, 0.0
      %vm2096 = vcmp.gt.f32.partialorder %v1976, 0.0
      %vm2097 = vcmp.gt.f32.partialorder %v1981, 0.0
      %vm2098 = vcmp.gt.f32.partialorder %v1986, 0.0
      %vm2099 = vcmp.gt.f32.partialorder %v1991, 0.0
      %vm2100 = vcmp.gt.f32.partialorder %v1996, 0.0
      %vm2101 = vcmp.gt.f32.partialorder %v2001, 0.0
      %vm2102 = vcmp.gt.f32.partialorder %v2006, 0.0
      %vm2103 = vcmp.gt.f32.partialorder %v2011, 0.0
      %vm2104 = vcmp.gt.f32.partialorder %v2016, 0.0
      %vm2105 = vcmp.gt.f32.partialorder %v2021, 0.0
      %vm2106 = vcmp.gt.f32.partialorder %v2026, 0.0
      %vm2107 = vcmp.gt.f32.partialorder %v2031, 0.0
      %vm2108 = vcmp.gt.f32.partialorder %v2036, 0.0
      %v2109 = vmul.f32 %v2057, %v1956
      %v2110 = vmul.f32 %v2057, %v1961
      %v2111 = vmul.f32 %v2057, %v1966
      %v2112 = vmul.f32 %v2057, %v1971
      %v2113 = vmul.f32 %v2057, %v1976
      %v2114 = vmul.f32 %v2057, %v1981
      %v2115 = vmul.f32 %v2057, %v1986
      %v2116 = vmul.f32 %v2057, %v1991
      %v2117 = vmul.f32 %v2057, %v1996
      %v2118 = vmul.f32 %v2057, %v2001
      %v2119 = vmul.f32 %v2057, %v2006
      %v2120 = vmul.f32 %v2057, %v2011
      %v2121 = vmul.f32 %v2057, %v2016
      %v2122 = vmul.f32 %v2057, %v2021
      %v2123 = vmul.f32 %v2057, %v2026
      %v2124 = vmul.f32 %v2057, %v2031
      %v2125 = vmul.f32 %v2057, %v2036
      %v2126 = vsel %vm2092, %v1956, %v2109
      %v2127 = vsel %vm2093, %v1961, %v2110
      %v2128 = vsel %vm2094, %v1966, %v2111
      %v2129 = vsel %vm2095, %v1971, %v2112
      %v2130 = vsel %vm2096, %v1976, %v2113
      %v2131 = vsel %vm2097, %v1981, %v2114
      %v2132 = vsel %vm2098, %v1986, %v2115
      %v2133 = vsel %vm2099, %v1991, %v2116
      %v2134 = vsel %vm2100, %v1996, %v2117
      %v2135 = vsel %vm2101, %v2001, %v2118
      %v2136 = vsel %vm2102, %v2006, %v2119
      %v2137 = vsel %vm2103, %v2011, %v2120
      %v2138 = vsel %vm2104, %v2016, %v2121
      %v2139 = vsel %vm2105, %v2021, %v2122
      %v2140 = vsel %vm2106, %v2026, %v2123
      %v2141 = vsel %vm2107, %v2031, %v2124
      %v2142 = vsel %vm2108, %v2036, %v2125
      %p2143 = scmp.eq.s32.totalorder %s22, 0
      %s2144 = scalar_select %p2143, 1, 0
      %v2145 = vstv %s2144
      %vm2146 = vcmp.eq.s32.totalorder %v2145, 1
      %v2147 = vsel %vm2146, %v2077, %v2075
      %v2148 = vsel %vm2146, %v2128, %v2126
      %2157 = vrot.lane.b32.xlu0 %v2076, 4
      %v2158 = vpop.permute.xlu0 %2157
      %2159 = vrot.lane.b32.xlu0 %v2078, 4
      %v2160 = vpop.permute.xlu0 %2159
      %2161 = vrot.lane.b32.xlu0 %v2080, 4
      %v2162 = vpop.permute.xlu0 %2161
      %2163 = vrot.lane.b32.xlu0 %v2082, 4
      %v2164 = vpop.permute.xlu0 %2163
      %2165 = vrot.lane.b32.xlu0 %v2084, 4
      %v2166 = vpop.permute.xlu0 %2165
      %2167 = vrot.lane.b32.xlu0 %v2086, 4
      %v2168 = vpop.permute.xlu0 %2167
      %2169 = vrot.lane.b32.xlu0 %v2088, 4
      %v2170 = vpop.permute.xlu0 %2169
      %2171 = vrot.lane.b32.xlu0 %v2090, 4
      %v2172 = vpop.permute.xlu0 %2171
      %2189 = vrot.lane.b32.xlu0 %v2077, 8
      %v2190 = vpop.permute.xlu0 %2189
      %2191 = vrot.lane.b32.xlu0 %v2079, 8
      %v2192 = vpop.permute.xlu0 %2191
      %2193 = vrot.lane.b32.xlu0 %v2081, 8
      %v2194 = vpop.permute.xlu0 %2193
      %2195 = vrot.lane.b32.xlu0 %v2083, 8
      %v2196 = vpop.permute.xlu0 %2195
      %2197 = vrot.lane.b32.xlu0 %v2085, 8
      %v2198 = vpop.permute.xlu0 %2197
      %2199 = vrot.lane.b32.xlu0 %v2087, 8
      %v2200 = vpop.permute.xlu0 %2199
      %2201 = vrot.lane.b32.xlu0 %v2089, 8
      %v2202 = vpop.permute.xlu0 %2201
      %2203 = vrot.lane.b32.xlu0 %v2091, 8
      %v2204 = vpop.permute.xlu0 %2203
      %v2213 = vsel %vm863, %v2147, %v2158
      %v2214 = vsel %vm863, %v2077, %v2160
      %v2215 = vsel %vm863, %v2079, %v2162
      %v2216 = vsel %vm863, %v2081, %v2164
      %v2217 = vsel %vm863, %v2083, %v2166
      %v2218 = vsel %vm863, %v2085, %v2168
      %v2219 = vsel %vm863, %v2087, %v2170
      %v2220 = vsel %vm863, %v2089, %v2172
      %v2221 = vsel %vm881, %v2213, %v2190
      %v2222 = vsel %vm881, %v2214, %v2192
      %v2223 = vsel %vm881, %v2215, %v2194
      %v2224 = vsel %vm881, %v2216, %v2196
      %v2225 = vsel %vm881, %v2217, %v2198
      %v2226 = vsel %vm881, %v2218, %v2200
      %v2227 = vsel %vm881, %v2219, %v2202
      %v2228 = vsel %vm881, %v2220, %v2204
      %2237 = vrot.lane.b32.xlu0 %v2127, 4
      %v2238 = vpop.permute.xlu0 %2237
      %2239 = vrot.lane.b32.xlu0 %v2129, 4
      %v2240 = vpop.permute.xlu0 %2239
      %2241 = vrot.lane.b32.xlu0 %v2131, 4
      %v2242 = vpop.permute.xlu0 %2241
      %2243 = vrot.lane.b32.xlu0 %v2133, 4
      %v2244 = vpop.permute.xlu0 %2243
      %2245 = vrot.lane.b32.xlu0 %v2135, 4
      %v2246 = vpop.permute.xlu0 %2245
      %2247 = vrot.lane.b32.xlu0 %v2137, 4
      %v2248 = vpop.permute.xlu0 %2247
      %2249 = vrot.lane.b32.xlu0 %v2139, 4
      %v2250 = vpop.permute.xlu0 %2249
      %2251 = vrot.lane.b32.xlu0 %v2141, 4
      %v2252 = vpop.permute.xlu0 %2251
      %2269 = vrot.lane.b32.xlu0 %v2128, 8
      %v2270 = vpop.permute.xlu0 %2269
      %2271 = vrot.lane.b32.xlu0 %v2130, 8
      %v2272 = vpop.permute.xlu0 %2271
      %2273 = vrot.lane.b32.xlu0 %v2132, 8
      %v2274 = vpop.permute.xlu0 %2273
      %2275 = vrot.lane.b32.xlu0 %v2134, 8
      %v2276 = vpop.permute.xlu0 %2275
      %2277 = vrot.lane.b32.xlu0 %v2136, 8
      %v2278 = vpop.permute.xlu0 %2277
      %2279 = vrot.lane.b32.xlu0 %v2138, 8
      %v2280 = vpop.permute.xlu0 %2279
      %2281 = vrot.lane.b32.xlu0 %v2140, 8
      %v2282 = vpop.permute.xlu0 %2281
      %2283 = vrot.lane.b32.xlu0 %v2142, 8
      %v2284 = vpop.permute.xlu0 %2283
      %v2293 = vsel %vm863, %v2148, %v2238
      %v2294 = vsel %vm863, %v2128, %v2240
      %v2295 = vsel %vm863, %v2130, %v2242
      %v2296 = vsel %vm863, %v2132, %v2244
      %v2297 = vsel %vm863, %v2134, %v2246
      %v2298 = vsel %vm863, %v2136, %v2248
      %v2299 = vsel %vm863, %v2138, %v2250
      %v2300 = vsel %vm863, %v2140, %v2252
      %v2301 = vsel %vm881, %v2293, %v2270
      %v2302 = vsel %vm881, %v2294, %v2272
      %v2303 = vsel %vm881, %v2295, %v2274
      %v2304 = vsel %vm881, %v2296, %v2276
      %v2305 = vsel %vm881, %v2297, %v2278
      %v2306 = vsel %vm881, %v2298, %v2280
      %v2307 = vsel %vm881, %v2299, %v2282
      %v2308 = vsel %vm881, %v2300, %v2284
      %v2309 = vld [vmem:[%s2] sm:$0xff]
      %v2310 = vld [vmem:[%s2 + $0x8] sm:$0xf]
      %v2312 = vsel %vm899, %v2221, 0
      %v2315 = vsel %vm899, %v2222, 0
      %v2318 = vsel %vm899, %v2223, 0
      %v2321 = vsel %vm899, %v2224, 0
      %v2324 = vsel %vm899, %v2225, 0
      %v2327 = vsel %vm899, %v2226, 0
      %v2330 = vsel %vm899, %v2227, 0
      %v2333 = vsel %vm899, %v2228, 0
      %v2336 = vsel %vm1684, %v2310, 0
      %2338 = vmatprep.subr.mxu0 0.0
      %2339 = vmatpush1.msra.mxu0 0.0
      %2340 = vmatprep.subr.mxu0 0.0
      %2341 = vmatpush1.msra.mxu0 0.0
      %2342 = vmatprep.subr.mxu0 0.0
      %2343 = vmatpush1.msra.mxu0 0.0
      %2344 = vmatprep.subr.mxu0 0.0
      %2345 = vmatpush1.msra.mxu0 0.0
      %2346 = vmatprep.subr.mxu0 0.0
      %2347 = vmatpush1.msra.mxu0 0.0
      %2348 = vmatprep.subr.mxu0 0.0
      %2349 = vmatpush1.msra.mxu0 0.0
      %2350 = vmatprep.subr.mxu0 0.0
      %2351 = vmatpush1.msra.mxu0 0.0
      %2352 = vmatprep.subr.mxu0 0.0
      %2353 = vmatpush1.msra.mxu0 0.0
      %2354 = vmatprep.subr.mxu0 0.0
      %2355 = vmatpush1.msra.mxu0 0.0
      %2356 = vmatprep.subr.mxu0 0.0
      %2357 = vmatpush1.msra.mxu0 0.0
      %2358 = vmatprep.subr.mxu0 0.0
      %2359 = vmatpush1.msra.mxu0 0.0
      %2360 = vmatprep.subr.mxu0 0.0
      %2361 = vmatpush1.msra.mxu0 0.0
      %2362 = vmatprep.subr.mxu0 0.0
      %2363 = vmatpush1.msra.mxu0 0.0
      %2364 = vmatprep.subr.mxu0 0.0
      %2365 = vmatpush1.msra.mxu0 0.0
      %2366 = vmatprep.subr.mxu0 0.0
      %2367 = vmatpush1.msra.mxu0 %v2336
      %2368 = vmatprep.subr.mxu0 0.0
      %2369 = vmatpush1.msra.mxu0 %v2309
      %2370 = vmatprep.subr.mxu0 0.0
      %2371 = vmatpush2.msra.mxu0 0.0
      %2372 = vmatprep.subr.mxu0 0.0
      %2373 = vmatpush2.msra.mxu0 0.0
      %2374 = vmatprep.subr.mxu0 0.0
      %2375 = vmatpush2.msra.mxu0 0.0
      %2376 = vmatprep.subr.mxu0 0.0
      %2377 = vmatpush2.msra.mxu0 0.0
      %2378 = vmatprep.subr.mxu0 0.0
      %2379 = vmatpush2.msra.mxu0 0.0
      %2380 = vmatprep.subr.mxu0 0.0
      %2381 = vmatpush2.msra.mxu0 0.0
      %2382 = vmatprep.subr.mxu0 0.0
      %2383 = vmatpush2.msra.mxu0 0.0
      %2384 = vmatprep.subr.mxu0 0.0
      %2385 = vmatpush2.msra.mxu0 0.0
      %2386 = vmatprep.subr.mxu0 0.0
      %2387 = vmatpush2.msra.mxu0 0.0
      %2388 = vmatprep.subr.mxu0 0.0
      %2389 = vmatpush2.msra.mxu0 0.0
      %2390 = vmatprep.subr.mxu0 0.0
      %2391 = vmatpush2.msra.mxu0 0.0
      %2392 = vmatprep.subr.mxu0 0.0
      %2393 = vmatpush2.msra.mxu0 0.0
      %2394 = vmatprep.subr.mxu0 0.0
      %2395 = vmatpush2.msra.mxu0 0.0
      %2396 = vmatprep.subr.mxu0 0.0
      %2397 = vmatpush2.msra.mxu0 0.0
      %2398 = vmatprep.subr.mxu0 0.0
      %2399 = vmatpush2.msra.mxu0 0.0
      %2400 = vmatprep.subr.mxu0 0.0
      %2401 = vmatpush2.msra.mxu0 0.0
      %2402 = vmatprep.mubr.f32.mxu0 0.0
      %2403 = vmatmul.mubr.f32.gmra.mxu0 %v2312
      %v2404 = vpop.f32.mrf.mxu0
      %v2405 = vadd.f32 0.0, %v2404
      %v2406 = vpop.f32.mrf.mxu0
      %2407 = vmatprep.mubr.f32.mxu0 0.0
      %2408 = vmatmul.mubr.f32.gmra.mxu0 %v2315
      %v2409 = vpop.f32.mrf.mxu0
      %v2410 = vadd.f32 0.0, %v2409
      %v2411 = vpop.f32.mrf.mxu0
      %2412 = vmatprep.mubr.f32.mxu0 0.0
      %2413 = vmatmul.mubr.f32.gmra.mxu0 %v2318
      %v2414 = vpop.f32.mrf.mxu0
      %v2415 = vadd.f32 0.0, %v2414
      %v2416 = vpop.f32.mrf.mxu0
      %2417 = vmatprep.mubr.f32.mxu0 0.0
      %2418 = vmatmul.mubr.f32.gmra.mxu0 %v2321
      %v2419 = vpop.f32.mrf.mxu0
      %v2420 = vadd.f32 0.0, %v2419
      %v2421 = vpop.f32.mrf.mxu0
      %2422 = vmatprep.mubr.f32.mxu0 0.0
      %2423 = vmatmul.mubr.f32.gmra.mxu0 %v2324
      %v2424 = vpop.f32.mrf.mxu0
      %v2425 = vadd.f32 0.0, %v2424
      %v2426 = vpop.f32.mrf.mxu0
      %2427 = vmatprep.mubr.f32.mxu0 0.0
      %2428 = vmatmul.mubr.f32.gmra.mxu0 %v2327
      %v2429 = vpop.f32.mrf.mxu0
      %v2430 = vadd.f32 0.0, %v2429
      %v2431 = vpop.f32.mrf.mxu0
      %2432 = vmatprep.mubr.f32.mxu0 0.0
      %2433 = vmatmul.mubr.f32.gmra.mxu0 %v2330
      %v2434 = vpop.f32.mrf.mxu0
      %v2435 = vadd.f32 0.0, %v2434
      %v2436 = vpop.f32.mrf.mxu0
      %2437 = vmatprep.mubr.f32.mxu0 0.0
      %2438 = vmatmul.mubr.f32.gmra.mxu0 %v2333
      %v2439 = vpop.f32.mrf.mxu0
      %v2440 = vadd.f32 0.0, %v2439
      %v2441 = vpop.f32.mrf.mxu0
      %2442 = vdwg.mxu0
      %v2443 = vld [vmem:[%s3] sm:$0xff]
      %v2444 = vld [vmem:[%s3 + $0x8] sm:$0xf]
      %v2446 = vsel %vm899, %v2301, 0
      %v2449 = vsel %vm899, %v2302, 0
      %v2452 = vsel %vm899, %v2303, 0
      %v2455 = vsel %vm899, %v2304, 0
      %v2458 = vsel %vm899, %v2305, 0
      %v2461 = vsel %vm899, %v2306, 0
      %v2464 = vsel %vm899, %v2307, 0
      %v2467 = vsel %vm899, %v2308, 0
      %v2470 = vsel %vm1684, %v2444, 0
      %2472 = vmatprep.subr.mxu0 0.0
      %2473 = vmatpush1.msra.mxu0 0.0
      %2474 = vmatprep.subr.mxu0 0.0
      %2475 = vmatpush1.msra.mxu0 0.0
      %2476 = vmatprep.subr.mxu0 0.0
      %2477 = vmatpush1.msra.mxu0 0.0
      %2478 = vmatprep.subr.mxu0 0.0
      %2479 = vmatpush1.msra.mxu0 0.0
      %2480 = vmatprep.subr.mxu0 0.0
      %2481 = vmatpush1.msra.mxu0 0.0
      %2482 = vmatprep.subr.mxu0 0.0
      %2483 = vmatpush1.msra.mxu0 0.0
      %2484 = vmatprep.subr.mxu0 0.0
      %2485 = vmatpush1.msra.mxu0 0.0
      %2486 = vmatprep.subr.mxu0 0.0
      %2487 = vmatpush1.msra.mxu0 0.0
      %2488 = vmatprep.subr.mxu0 0.0
      %2489 = vmatpush1.msra.mxu0 0.0
      %2490 = vmatprep.subr.mxu0 0.0
      %2491 = vmatpush1.msra.mxu0 0.0
      %2492 = vmatprep.subr.mxu0 0.0
      %2493 = vmatpush1.msra.mxu0 0.0
      %2494 = vmatprep.subr.mxu0 0.0
      %2495 = vmatpush1.msra.mxu0 0.0
      %2496 = vmatprep.subr.mxu0 0.0
      %2497 = vmatpush1.msra.mxu0 0.0
      %2498 = vmatprep.subr.mxu0 0.0
      %2499 = vmatpush1.msra.mxu0 0.0
      %2500 = vmatprep.subr.mxu0 0.0
      %2501 = vmatpush1.msra.mxu0 %v2470
      %2502 = vmatprep.subr.mxu0 0.0
      %2503 = vmatpush1.msra.mxu0 %v2443
      %2504 = vmatprep.subr.mxu0 0.0
      %2505 = vmatpush2.msra.mxu0 0.0
      %2506 = vmatprep.subr.mxu0 0.0
      %2507 = vmatpush2.msra.mxu0 0.0
      %2508 = vmatprep.subr.mxu0 0.0
      %2509 = vmatpush2.msra.mxu0 0.0
      %2510 = vmatprep.subr.mxu0 0.0
      %2511 = vmatpush2.msra.mxu0 0.0
      %2512 = vmatprep.subr.mxu0 0.0
      %2513 = vmatpush2.msra.mxu0 0.0
      %2514 = vmatprep.subr.mxu0 0.0
      %2515 = vmatpush2.msra.mxu0 0.0
      %2516 = vmatprep.subr.mxu0 0.0
      %2517 = vmatpush2.msra.mxu0 0.0
      %2518 = vmatprep.subr.mxu0 0.0
      %2519 = vmatpush2.msra.mxu0 0.0
      %2520 = vmatprep.subr.mxu0 0.0
      %2521 = vmatpush2.msra.mxu0 0.0
      %2522 = vmatprep.subr.mxu0 0.0
      %2523 = vmatpush2.msra.mxu0 0.0
      %2524 = vmatprep.subr.mxu0 0.0
      %2525 = vmatpush2.msra.mxu0 0.0
      %2526 = vmatprep.subr.mxu0 0.0
      %2527 = vmatpush2.msra.mxu0 0.0
      %2528 = vmatprep.subr.mxu0 0.0
      %2529 = vmatpush2.msra.mxu0 0.0
      %2530 = vmatprep.subr.mxu0 0.0
      %2531 = vmatpush2.msra.mxu0 0.0
      %2532 = vmatprep.subr.mxu0 0.0
      %2533 = vmatpush2.msra.mxu0 0.0
      %2534 = vmatprep.subr.mxu0 0.0
      %2535 = vmatpush2.msra.mxu0 0.0
      %2536 = vmatprep.mubr.f32.mxu0 0.0
      %2537 = vmatmul.mubr.f32.gmra.mxu0 %v2446
      %v2538 = vpop.f32.mrf.mxu0
      %v2539 = vadd.f32 0.0, %v2538
      %v2540 = vpop.f32.mrf.mxu0
      %2541 = vmatprep.mubr.f32.mxu0 0.0
      %2542 = vmatmul.mubr.f32.gmra.mxu0 %v2449
      %v2543 = vpop.f32.mrf.mxu0
      %v2544 = vadd.f32 0.0, %v2543
      %v2545 = vpop.f32.mrf.mxu0
      %2546 = vmatprep.mubr.f32.mxu0 0.0
      %2547 = vmatmul.mubr.f32.gmra.mxu0 %v2452
      %v2548 = vpop.f32.mrf.mxu0
      %v2549 = vadd.f32 0.0, %v2548
      %v2550 = vpop.f32.mrf.mxu0
      %2551 = vmatprep.mubr.f32.mxu0 0.0
      %2552 = vmatmul.mubr.f32.gmra.mxu0 %v2455
      %v2553 = vpop.f32.mrf.mxu0
      %v2554 = vadd.f32 0.0, %v2553
      %v2555 = vpop.f32.mrf.mxu0
      %2556 = vmatprep.mubr.f32.mxu0 0.0
      %2557 = vmatmul.mubr.f32.gmra.mxu0 %v2458
      %v2558 = vpop.f32.mrf.mxu0
      %v2559 = vadd.f32 0.0, %v2558
      %v2560 = vpop.f32.mrf.mxu0
      %2561 = vmatprep.mubr.f32.mxu0 0.0
      %2562 = vmatmul.mubr.f32.gmra.mxu0 %v2461
      %v2563 = vpop.f32.mrf.mxu0
      %v2564 = vadd.f32 0.0, %v2563
      %v2565 = vpop.f32.mrf.mxu0
      %2566 = vmatprep.mubr.f32.mxu0 0.0
      %2567 = vmatmul.mubr.f32.gmra.mxu0 %v2464
      %v2568 = vpop.f32.mrf.mxu0
      %v2569 = vadd.f32 0.0, %v2568
      %v2570 = vpop.f32.mrf.mxu0
      %2571 = vmatprep.mubr.f32.mxu0 0.0
      %2572 = vmatmul.mubr.f32.gmra.mxu0 %v2467
      %v2573 = vpop.f32.mrf.mxu0
      %v2574 = vadd.f32 0.0, %v2573
      %v2575 = vpop.f32.mrf.mxu0
      %2576 = vdwg.mxu0
      %v2577 = vrot.slane %v2539, 7
      %v2578 = vrot.slane %v2544, 7
      %v2579 = vrot.slane %v2549, 7
      %v2580 = vrot.slane %v2554, 7
      %v2581 = vrot.slane %v2559, 7
      %v2582 = vrot.slane %v2564, 7
      %v2583 = vrot.slane %v2569, 7
      %v2584 = vrot.slane %v2574, 7
      %v2585 = vlaneseq
      %v2586 = vshrl.u32 %v2585, 7
      %vm2587 = vcmp.lt.s32.totalorder %v2586, 1
      %v2588 = vsel %vm2587, %v2583, %v2584
      %v2589 = vsel %vm2587, %v2582, %v2583
      %v2590 = vsel %vm2587, %v2581, %v2582
      %v2591 = vsel %vm2587, %v2580, %v2581
      %v2592 = vsel %vm2587, %v2579, %v2580
      %v2593 = vsel %vm2587, %v2578, %v2579
      %v2594 = vsel %vm2587, %v2577, %v2578
      %v2595 = vsel %vm2587, %v2584, %v2577
      %vm2596 = vcmp.eq.s32.totalorder %v2586, 0
      %v2597 = vsel %vm2596, %v2539, %v2595
      %v2598 = vsel %vm2596, %v2544, %v2594
      %v2599 = vsel %vm2596, %v2549, %v2593
      %v2600 = vsel %vm2596, %v2554, %v2592
      %v2601 = vsel %vm2596, %v2559, %v2591
      %v2602 = vsel %vm2596, %v2564, %v2590
      %v2603 = vsel %vm2596, %v2569, %v2589
      %v2604 = vsel %vm2596, %v2574, %v2588
      %v2605 = vadd.f32 %v2597, %v2405
      %v2606 = vadd.f32 %v2598, %v2410
      %v2607 = vadd.f32 %v2599, %v2415
      %v2608 = vadd.f32 %v2600, %v2420
      %v2609 = vadd.f32 %v2601, %v2425
      %v2610 = vadd.f32 %v2602, %v2430
      %v2611 = vadd.f32 %v2603, %v2435
      %v2612 = vadd.f32 %v2604, %v2440
      %2621 = vrot.lane.b32.xlu0 %v2539, 120
      %v2622 = vpop.permute.xlu0 %2621
      %2623 = vrot.lane.b32.xlu0 %v2544, 120
      %v2624 = vpop.permute.xlu0 %2623
      %2625 = vrot.lane.b32.xlu0 %v2549, 120
      %v2626 = vpop.permute.xlu0 %2625
      %2627 = vrot.lane.b32.xlu0 %v2554, 120
      %v2628 = vpop.permute.xlu0 %2627
      %2629 = vrot.lane.b32.xlu0 %v2559, 120
      %v2630 = vpop.permute.xlu0 %2629
      %2631 = vrot.lane.b32.xlu0 %v2564, 120
      %v2632 = vpop.permute.xlu0 %2631
      %2633 = vrot.lane.b32.xlu0 %v2569, 120
      %v2634 = vpop.permute.xlu0 %2633
      %2635 = vrot.lane.b32.xlu0 %v2574, 120
      %v2636 = vpop.permute.xlu0 %2635
      %v2645 = vadd.f32 %v2605, %v2622
      %v2646 = vadd.f32 %v2606, %v2624
      %v2647 = vadd.f32 %v2607, %v2626
      %v2648 = vadd.f32 %v2608, %v2628
      %v2649 = vadd.f32 %v2609, %v2630
      %v2650 = vadd.f32 %v2610, %v2632
      %v2651 = vadd.f32 %v2611, %v2634
      %v2652 = vadd.f32 %v2612, %v2636
      %2653 = vst.msk [vmem:[%s261] sm:$0xff] %vm881, %v2645
      %2654 = vst.msk [vmem:[%s261 + $0x8] sm:$0xff] %vm881, %v2646
      %2655 = vst.msk [vmem:[%s261 + $0x10] sm:$0xff] %vm881, %v2647
      %2656 = vst.msk [vmem:[%s261 + $0x18] sm:$0xff] %vm881, %v2648
      %2657 = vst.msk [vmem:[%s261 + $0x20] sm:$0xff] %vm881, %v2649
      %2658 = vst.msk [vmem:[%s261 + $0x28] sm:$0xff] %vm881, %v2650
      %2659 = vst.msk [vmem:[%s261 + $0x30] sm:$0xff] %vm881, %v2651
      %2660 = vst.msk [vmem:[%s261 + $0x38] sm:$0xff] %vm881, %v2652
      %s2661 = smul.u32 8, %s22
      %p2662 = scmp.lt.s32.totalorder %s21, 1
      %s2663 = scalar_select %p2662, %s21, 1
      %p2664 = scmp.lt.s32.totalorder %s2661, 7
      %s2665 = scalar_select %p2664, %s2661, 7
      %s2666 = smul.addr %s2663, 8
      %s2667 = sadd.s32 %s2665, %s2666
      %s2668 = smul.addr %s2667, 8
      %s2669 = scalar_lea.vmem %s5, %s2668
      // Predicated region
      $region41: #{downsample_forward.1} parent=39 // pred_check
        %p2670 = pneg %p161
      $region42: #{downsample_forward.1} parent=39 // pred_check_branch
        %2672 = sbr.rel (%p2670) target = $region44
      $region43: #{downsample_forward.1} parent=39 // pred_region
        %s2673 = smul.u32 8, %s22
      $region44: #{downsample_forward.1} parent=39 // pred_fallthru
        _
    $region40: #{downsample_forward.1} parent=5 // pred_fallthru
      _
    %p2674 = scmp.le.s32.totalorder 2, %s12
    // Predicated region
    $region45: #{downsample_forward.1} parent=5 // pred_check
      %p2675 = pneg %p2674
    $region46: #{downsample_forward.1} parent=5 // pred_check_branch
      %2677 = sbr.rel (%p2675) target = $region48
    $region47: #{downsample_forward.1} parent=5 // pred_region
      %s2678 = ssub.s32 %s12, 2
      // Predicated region
      $region49: #{downsample_forward.1} parent=47 // pred_check
        %p2679 = pneg %p167
      $region50: #{downsample_forward.1} parent=47 // pred_check_branch
        %2681 = sbr.rel (%p2679) target = $region52
      $region51: #{downsample_forward.1} parent=47 // pred_region
        %s2682 = smul.u32 8, %s24
        %p2683 = scmp.lt.s32.totalorder %s23, 1
        %s2684 = scalar_select %p2683, %s23, 1
        %p2685 = scmp.lt.s32.totalorder %s2682, 7
        %s2686 = scalar_select %p2685, %s2682, 7
        %s2687 = smul.addr %s2684, 8
        %s2688 = sadd.s32 %s2686, %s2687
        %s2689 = smul.addr %s2688, 8
        %s2690 = scalar_lea.vmem %s5, %s2689
      $region52: #{downsample_forward.1} parent=47 // pred_fallthru
        _
    $region48: #{downsample_forward.1} parent=5 // pred_fallthru
      _
  $region6: #{downsample_forward.1} parent=0 // loop_footer
    %s16 = sadd.s32 1, %s12
  $region7: #{downsample_forward.1} parent=0 // loop_footer_branch
    %11 = sbr.rel target = $region3
  $region8: #{downsample_forward.1} parent=0 // loop_exit
    _

</llo_original>
